<compile_context>
chip_gen: v7x
topology: tpu7x:2x2x1
jax: 0.10.0
libtpu: 0.0.40
codegen_flags: <defaults>
</compile_context>

<pallas_src>
import jax
import jax.numpy as jnp
from jax import lax
from jax.experimental import pallas as pl
from jax.experimental.pallas import tpu as pltpu


# --------------------------------------------------------------------------- #
# Kernel
# --------------------------------------------------------------------------- #
def _l2norm_linear_kernel(x_ref, w_ref, o_ref, inv_ref, acc_ref):
    # x_ref: (tm, tk), w_ref: (tn, tk), o_ref: (tm, tn)
    # inv_ref: (1, tn) f32  -- cached per-class 1/||w|| (valid after batch tile 0)
    # acc_ref: (tm, tn) f32 -- matmul accumulator across the K axis
    i = pl.program_id(1)          # batch tile index  (axis must be "arbitrary")
    k = pl.program_id(2)          # K reduction tile index (innermost)
    nk = pl.num_programs(2)
    first_batch = i == 0
    last_k = k == nk - 1

    # ---- per-class inverse L2 norms (computed once per class tile) ---------
    @pl.when(jnp.logical_and(first_batch, k == 0))
    def _():
        inv_ref[...] = jnp.zeros_like(inv_ref)

    @pl.when(first_batch)
    def _():
        w32 = w_ref[...].astype(jnp.float32)
        inv_ref[...] += jnp.sum(w32 * w32, axis=-1, keepdims=True).T   # (1, tn)

    @pl.when(jnp.logical_and(first_batch, last_k))
    def _():
        # clamp at eps^2 = 1e-24  ==  F.normalize(dim=-1, eps=1e-12)
        inv_ref[...] = lax.rsqrt(jnp.maximum(inv_ref[...], 1e-24))

    # ---- NT matmul on the MXU, f32 accumulation across K -------------------
    part = lax.dot_general(
        x_ref[...], w_ref[...],
        dimension_numbers=(((1,), (1,)), ((), ())),   # contract K with K, no .T
        preferred_element_type=jnp.float32,
    )                                                  # (tm, tn) f32

    @pl.when(k == 0)
    def _():
        acc_ref[...] = part

    @pl.when(k > 0)
    def _():
        acc_ref[...] += part

    @pl.when(last_k)
    def _():
        o_ref[...] = (acc_ref[...] * inv_ref[...]).astype(o_ref.dtype)


# --------------------------------------------------------------------------- #
# Tiling helpers
# --------------------------------------------------------------------------- #
def _cdiv(a, b):
    return -(-a // b)


def _round_up(v, m):
    return _cdiv(v, m) * m


def _tile_and_pad(dim, candidates, min_align, prefer_even=False):
    """Pick a tile size from `candidates`; return (tile, padded_dim)."""
    d = _round_up(dim, min_align)
    divisors = [c for c in candidates if d % c == 0]
    if divisors:
        if prefer_even:
            even = [c for c in divisors if (d // c) % 2 == 0]
            if even:
                return even[0], d
        return divisors[0], d
    # Nothing divides: pad up, preferring large tiles if the waste stays small.
    for c in candidates:
        padded = _round_up(d, c)
        if padded - dim <= max(dim // 8, min_align):
            return c, padded
    c = candidates[-1]
    return c, _round_up(d, c)


def _vmem_footprint(tm, tn, tk, in_dsize, out_dsize):
    return (2 * tm * tk * in_dsize      # x block, double buffered
            + 2 * tn * tk * in_dsize    # weight block, double buffered
            + 2 * tm * tn * out_dsize   # output block, double buffered
            + tm * tn * 4               # f32 accumulator scratch
            + tn * 4)                   # inv-norm scratch


# --------------------------------------------------------------------------- #
# Wrapper
# --------------------------------------------------------------------------- #
def l2_normed_classifier(x, weight, *, tm=None, tn=None, tk=None,
                         vmem_budget_bytes=None,
                         prefer_even_class_tiles=False):
    """x: (B, feat_dim), weight: (num_classes, feat_dim) -> (B, num_classes).

    Equivalent to F.linear(x, F.normalize(weight, dim=-1)).
    Set prefer_even_class_tiles=True on 2-TensorCore parts (v7x) so the
    "parallel" class axis splits evenly across cores.
    """
    B, K = x.shape
    N, Kw = weight.shape
    assert K == Kw, "feature dims must match"

    in_dsize = max(x.dtype.itemsize, weight.dtype.itemsize)
    out_dtype = x.dtype
    out_dsize = jnp.dtype(out_dtype).itemsize

    # ---- batch / class tiles (pad rather than accept sub-sublane tiles) ----
    if tm is None:
        tm, Bp = _tile_and_pad(B, (256, 128, 64, 32, 16, 8), 8)
    else:
        assert tm % 8 == 0, "tm must be a multiple of 8 sublanes"
        Bp = _round_up(B, tm)
    if tn is None:
        tn, Np = _tile_and_pad(N, (512, 256, 128), 128,
                               prefer_even=prefer_even_class_tiles)
    else:
        assert tn % 128 == 0, "tn must be a multiple of 128 lanes"
        Np = _round_up(N, tn)

    # ---- VMEM budget (conservative default works on v5e/v6e/v7x) -----------
    if vmem_budget_bytes is None:
        try:
            vmem_cap = int(pltpu.get_tpu_info().vmem_capacity_bytes)
        except Exception:
            vmem_cap = 64 << 20          # safe fallback (v7x per-TC capacity)
        vmem_budget_bytes = int(vmem_cap * 0.6)
    else:
        vmem_cap = max(64 << 20, int(vmem_budget_bytes * 2))

    # ---- K tiling: only when the untiled blocks would blow the budget ------
    if tk is None:
        if _vmem_footprint(tm, tn, K, in_dsize, out_dsize) <= vmem_budget_bytes:
            tk, Kp, nk = K, K, 1          # weight tile resident across batch loop
        else:
            fixed = 2 * tm * tn * out_dsize + tm * tn * 4 + tn * 4
            per_k = 2 * (tm + tn) * in_dsize
            tk_cap = max(128, ((vmem_budget_bytes - fixed) // per_k) // 128 * 128)
            nk = _cdiv(K, tk_cap)
            tk = _round_up(_cdiv(K, nk), 128)   # minimize K padding
            Kp = nk * tk
    else:
        if tk >= K:
            tk, Kp, nk = K, K, 1
        else:
            assert tk % 128 == 0, "tk must be a multiple of 128 lanes"
            nk = _cdiv(K, tk)
            Kp = nk * tk

    # ---- zero-pad to tile-aligned shapes (exact: zeros contribute nothing) -
    x_p = x if (Bp, Kp) == (B, K) else jnp.pad(x, ((0, Bp - B), (0, Kp - K)))
    w_p = weight if (Np, Kp) == (N, K) else jnp.pad(weight,
                                                    ((0, Np - N), (0, Kp - K)))

    nj, ni = Np // tn, Bp // tm
    grid = (nj, ni, nk)

    # ---- compiler params: explicit scoped-VMEM limit + cost estimate -------
    footprint = _vmem_footprint(tm, tn, tk, in_dsize, out_dsize)
    vmem_limit = int(min(max(footprint + (8 << 20), 32 << 20),
                         min(vmem_cap, 128 << 20)))

    x_stream_bytes = nj * Bp * Kp * x.dtype.itemsize        # x re-read per class tile
    w_stream_bytes = (ni if nk > 1 else 1) * Np * Kp * weight.dtype.itemsize
    o_stream_bytes = Bp * Np * out_dsize
    cost = pl.CostEstimate(
        flops=int(2 * Bp * Np * Kp + 2 * Np * Kp),
        transcendentals=int(Np),
        bytes_accessed=int(x_stream_bytes + w_stream_bytes + o_stream_bytes),
    )

    out = pl.pallas_call(
        _l2norm_linear_kernel,
        out_shape=jax.ShapeDtypeStruct((Bp, Np), out_dtype),
        grid_spec=pltpu.PrefetchScalarGridSpec(
            num_scalar_prefetch=0,
            grid=grid,
            in_specs=[
                pl.BlockSpec((tm, tk), lambda j, i, k: (i, k)),   # x tile
                pl.BlockSpec((tn, tk), lambda j, i, k: (j, k)),   # weight tile
            ],
            out_specs=pl.BlockSpec((tm, tn), lambda j, i, k: (i, j)),
            scratch_shapes=[
                pltpu.VMEM((1, tn), jnp.float32),    # cached inverse row norms
                pltpu.VMEM((tm, tn), jnp.float32),   # f32 matmul accumulator
            ],
        ),
        compiler_params=pltpu.CompilerParams(
            # class axis: parallel (megacore); batch & K: arbitrary — the
            # inv-norm cache and accumulator carry across them (do not change).
            dimension_semantics=("parallel", "arbitrary", "arbitrary"),
            vmem_limit_bytes=vmem_limit,
        ),
        cost_estimate=cost,
    )(x_p, w_p)

    if (Bp, Np) != (B, N):
        out = out[:B, :N]
    return out


# --------------------------------------------------------------------------- #
# Weight init matching torch: empty(C,F).uniform_(-1,1).renorm_(2,0,1e-5).mul_(1e5)
# --------------------------------------------------------------------------- #
def init_classifier_weight(key, num_classes, feat_dim, dtype=jnp.float32):
    w = jax.random.uniform(key, (num_classes, feat_dim), dtype=jnp.float32,
                           minval=-1.0, maxval=1.0)
    row_norm = jnp.linalg.norm(w, axis=-1, keepdims=True)
    maxnorm = 1e-5
    scale = jnp.where(row_norm > maxnorm, maxnorm / (row_norm + 1e-7), 1.0)
    w = w * scale * 1e5
    return w.astype(dtype)


# --------------------------------------------------------------------------- #
# Self-test
# --------------------------------------------------------------------------- #
if __name__ == "__main__":
    key = jax.random.PRNGKey(0)
    kx, kw = jax.random.split(key)

    def reference(xx, ww):
        w32 = ww.astype(jnp.float32)
        w_n = w32 / jnp.maximum(
            jnp.linalg.norm(w32, axis=-1, keepdims=True), 1e-12)
        return (xx.astype(jnp.float32) @ w_n.T).astype(xx.dtype)

    # -- case 1: tile-exercising shapes, untiled K (weight resident) ---------
    B, K, N = 384, 512, 768
    x = jax.random.normal(kx, (B, K), dtype=jnp.float32)
    w = init_classifier_weight(kw, N, K, dtype=jnp.float32)
    out = jax.block_until_ready(l2_normed_classifier(x, w))
    ref = reference(x, w)
    assert out.shape == (B, N)
    assert jnp.allclose(out, ref, atol=1e-3, rtol=1e-3), (
        float(jnp.max(jnp.abs(out - ref))))

    # -- case 2: forced K tiling (exercises accumulator + ssq-accumulate path)
    out2 = jax.block_until_ready(l2_normed_classifier(x, w, tk=128))
    assert jnp.allclose(out2, ref, atol=1e-3, rtol=1e-3), (
        float(jnp.max(jnp.abs(out2 - ref))))

    # -- case 3: ragged shapes -> batch / class / feature padding paths ------
    B3, K3, N3 = 100, 200, 200
    x3 = jax.random.normal(kx, (B3, K3), dtype=jnp.float32)
    w3 = init_classifier_weight(kw, N3, K3, dtype=jnp.float32)
    out3 = jax.block_until_ready(l2_normed_classifier(x3, w3, tk=128))
    ref3 = reference(x3, w3)
    assert out3.shape == (B3, N3)
    assert jnp.allclose(out3, ref3, atol=1e-3, rtol=1e-3), (
        float(jnp.max(jnp.abs(out3 - ref3))))

    print("KERNEL_OK")
</pallas_src>

<mosaic_0001>
module attributes {stable_mosaic.version = 11 : i64} {
  func.func @_l2norm_linear_kernel(%arg0: i32, %arg1: i32, %arg2: i32, %arg3: memref<128x512xf32, #tpu.memory_space<vmem>>, %arg4: memref<256x512xf32, #tpu.memory_space<vmem>>, %arg5: memref<128x256xf32, #tpu.memory_space<vmem>>, %arg6: memref<1x256xf32, #tpu.memory_space<vmem>>, %arg7: memref<128x256xf32, #tpu.memory_space<vmem>>) attributes {dimension_semantics = [#tpu.dimension_semantics<parallel>, #tpu.dimension_semantics<arbitrary>, #tpu.dimension_semantics<arbitrary>], iteration_bounds = array<i64: 3, 3, 1>, scalar_prefetch = 0 : i64, scratch_operands = 2 : i64, tpu.core_type = #tpu.core_type<tc>, window_params = [{transform_indices = @transform_0, window_bounds = array<i64: 128, 512>}, {transform_indices = @transform_1, window_bounds = array<i64: 256, 512>}, {transform_indices = @transform_2, window_bounds = array<i64: 128, 256>}]} {
    %c0_i32 = arith.constant 0 : i32
    %0 = arith.cmpi eq, %arg1, %c0_i32 : i32
    %c0_i32_0 = arith.constant 0 : i32
    %1 = arith.cmpi eq, %arg2, %c0_i32_0 : i32
    %c0_i32_1 = arith.constant 0 : i32
    %2 = arith.cmpi eq, %arg2, %c0_i32_1 : i32
    %3 = arith.andi %0, %2 : i1
    %4 = arith.extui %3 : i1 to i32
    %c0_i32_2 = arith.constant 0 : i32
    %5 = arith.cmpi ne, %4, %c0_i32_2 : i32
    scf.if %5 {
      %cst_13 = arith.constant 0.000000e+00 : f32
      %22 = vector.broadcast %cst_13 : f32 to vector<1x256xf32>
      %c0_14 = arith.constant 0 : index
      %c0_15 = arith.constant 0 : index
      %23 = vector.load %arg6[%c0_14, %c0_15] : memref<1x256xf32, #tpu.memory_space<vmem>>, vector<1x256xf32>
      tpu.vector_store %arg6[%c0_14, %c0_15], %22 {strides = array<i32>} : memref<1x256xf32, #tpu.memory_space<vmem>>, vector<1x256xf32>,
    } else {
    }
    %6 = arith.extui %0 : i1 to i32
    %c0_i32_3 = arith.constant 0 : i32
    %7 = arith.cmpi ne, %6, %c0_i32_3 : i32
    scf.if %7 {
      %c0_13 = arith.constant 0 : index
      %c0_14 = arith.constant 0 : index
      %22 = vector.load %arg4[%c0_13, %c0_14] : memref<256x512xf32, #tpu.memory_space<vmem>>, vector<256x512xf32>
      %c0_15 = arith.constant 0 : index
      %c0_16 = arith.constant 0 : index
      %23 = vector.load %arg6[%c0_15, %c0_16] : memref<1x256xf32, #tpu.memory_space<vmem>>, vector<1x256xf32>
      %24 = arith.mulf %22, %22 : vector<256x512xf32>
      %cst_17 = arith.constant dense<0.000000e+00> : vector<256xf32>
      %25 = vector.multi_reduction <add>, %24, %cst_17 [1] : vector<256x512xf32> to vector<256xf32>
      %26 = vector.shape_cast %25 : vector<256xf32> to vector<256x1xf32>
      %27 = tpu.transpose %26, [1, 0] : vector<256x1xf32> -> vector<1x256xf32>
      %28 = arith.addf %23, %27 : vector<1x256xf32>
      %c0_18 = arith.constant 0 : index
      %c0_19 = arith.constant 0 : index
      %29 = vector.load %arg6[%c0_18, %c0_19] : memref<1x256xf32, #tpu.memory_space<vmem>>, vector<1x256xf32>
      tpu.vector_store %arg6[%c0_18, %c0_19], %28 {strides = array<i32>} : memref<1x256xf32, #tpu.memory_space<vmem>>, vector<1x256xf32>,
    } else {
    }
    %8 = arith.andi %0, %1 : i1
    %9 = arith.extui %8 : i1 to i32
    %c0_i32_4 = arith.constant 0 : i32
    %10 = arith.cmpi ne, %9, %c0_i32_4 : i32
    scf.if %10 {
      %c0_13 = arith.constant 0 : index
      %c0_14 = arith.constant 0 : index
      %22 = vector.load %arg6[%c0_13, %c0_14] : memref<1x256xf32, #tpu.memory_space<vmem>>, vector<1x256xf32>
      %cst_15 = arith.constant 1.000000e-24 : f32
      %23 = vector.broadcast %cst_15 : f32 to vector<1x256xf32>
      %24 = arith.maximumf %22, %23 : vector<1x256xf32>
      %25 = math.rsqrt %24 : vector<1x256xf32>
      %c0_16 = arith.constant 0 : index
      %c0_17 = arith.constant 0 : index
      %26 = vector.load %arg6[%c0_16, %c0_17] : memref<1x256xf32, #tpu.memory_space<vmem>>, vector<1x256xf32>
      tpu.vector_store %arg6[%c0_16, %c0_17], %25 {strides = array<i32>} : memref<1x256xf32, #tpu.memory_space<vmem>>, vector<1x256xf32>,
    } else {
    }
    %c0 = arith.constant 0 : index
    %c0_5 = arith.constant 0 : index
    %11 = vector.load %arg3[%c0, %c0_5] : memref<128x512xf32, #tpu.memory_space<vmem>>, vector<128x512xf32>
    %c0_6 = arith.constant 0 : index
    %c0_7 = arith.constant 0 : index
    %12 = vector.load %arg4[%c0_6, %c0_7] : memref<256x512xf32, #tpu.memory_space<vmem>>, vector<256x512xf32>
    %cst = arith.constant dense<0.000000e+00> : vector<128x256xf32>
    %13 = tpu.matmul %11, %12, %cst {dimension_numbers = #tpu.dot_dimension_numbers<[1], [1], [0], [0], [0, 0, 1, 0], [], []>} : vector<128x512xf32>, vector<256x512xf32>, vector<128x256xf32> -> vector<128x256xf32>
    %c0_i32_8 = arith.constant 0 : i32
    %14 = arith.cmpi eq, %arg2, %c0_i32_8 : i32
    %15 = arith.extui %14 : i1 to i32
    %c0_i32_9 = arith.constant 0 : i32
    %16 = arith.cmpi ne, %15, %c0_i32_9 : i32
    scf.if %16 {
      %c0_13 = arith.constant 0 : index
      %c0_14 = arith.constant 0 : index
      %22 = vector.load %arg7[%c0_13, %c0_14] : memref<128x256xf32, #tpu.memory_space<vmem>>, vector<128x256xf32>
      tpu.vector_store %arg7[%c0_13, %c0_14], %13 {strides = array<i32>} : memref<128x256xf32, #tpu.memory_space<vmem>>, vector<128x256xf32>,
    } else {
    }
    %c0_i32_10 = arith.constant 0 : i32
    %17 = arith.cmpi sgt, %arg2, %c0_i32_10 : i32
    %18 = arith.extui %17 : i1 to i32
    %c0_i32_11 = arith.constant 0 : i32
    %19 = arith.cmpi ne, %18, %c0_i32_11 : i32
    scf.if %19 {
      %c0_13 = arith.constant 0 : index
      %c0_14 = arith.constant 0 : index
      %22 = vector.load %arg7[%c0_13, %c0_14] : memref<128x256xf32, #tpu.memory_space<vmem>>, vector<128x256xf32>
      %23 = arith.addf %22, %13 : vector<128x256xf32>
      %c0_15 = arith.constant 0 : index
      %c0_16 = arith.constant 0 : index
      %24 = vector.load %arg7[%c0_15, %c0_16] : memref<128x256xf32, #tpu.memory_space<vmem>>, vector<128x256xf32>
      tpu.vector_store %arg7[%c0_15, %c0_16], %23 {strides = array<i32>} : memref<128x256xf32, #tpu.memory_space<vmem>>, vector<128x256xf32>,
    } else {
    }
    %20 = arith.extui %1 : i1 to i32
    %c0_i32_12 = arith.constant 0 : i32
    %21 = arith.cmpi ne, %20, %c0_i32_12 : i32
    scf.if %21 {
      %c0_13 = arith.constant 0 : index
      %c0_14 = arith.constant 0 : index
      %22 = vector.load %arg7[%c0_13, %c0_14] : memref<128x256xf32, #tpu.memory_space<vmem>>, vector<128x256xf32>
      %c0_15 = arith.constant 0 : index
      %c0_16 = arith.constant 0 : index
      %23 = vector.load %arg6[%c0_15, %c0_16] : memref<1x256xf32, #tpu.memory_space<vmem>>, vector<1x256xf32>
      %24 = vector.broadcast %23 : vector<1x256xf32> to vector<128x256xf32>
      %25 = arith.mulf %22, %24 : vector<128x256xf32>
      %c0_17 = arith.constant 0 : index
      %c0_18 = arith.constant 0 : index
      %26 = vector.load %arg5[%c0_17, %c0_18] : memref<128x256xf32, #tpu.memory_space<vmem>>, vector<128x256xf32>
      tpu.vector_store %arg5[%c0_17, %c0_18], %25 {strides = array<i32>} : memref<128x256xf32, #tpu.memory_space<vmem>>, vector<128x256xf32>,
    } else {
    }
    return
  }
  func.func @transform_0(%arg0: i32, %arg1: i32, %arg2: i32) -> (i32, i32) {
    %c0_i32 = arith.constant 0 : i32
    return %arg1, %arg2 : i32, i32
  }
  func.func @transform_1(%arg0: i32, %arg1: i32, %arg2: i32) -> (i32, i32) {
    %c0_i32 = arith.constant 0 : i32
    return %arg0, %arg2 : i32, i32
  }
  func.func @transform_2(%arg0: i32, %arg1: i32, %arg2: i32) -> (i32, i32) {
    %c0_i32 = arith.constant 0 : i32
    return %arg1, %arg0 : i32, i32
  }
}

</mosaic_0001>

<llo_original>
// kernel: tpu_custom_call.1
$region0: #{tpu_custom_call.1}
  #allocation0 [shape = 'u32[]', space=smem, size = 0x4, offset = 0x4, fixed_abs, tag = 'smem constant byte address 0x4 - core index']
  #allocation1 [shape = 'u32[144,128]{1,0:T(1,128)}', space=vmem, size = 0x12000, scoped, tag = 'internal scratch']
  #allocation2 [shape = 'f32[1,256]{1,0:T(1,128)}', space=vmem, size = 0x400, scoped, tag = 'scratch operand']
  #allocation3 [shape = 'f32[128,256]{1,0:T(8,128)}', space=vmem, size = 0x20000, scoped, tag = 'scratch operand']
  %s0 = inlined_call_operand.hbm [shape: f32[384,512], index: 0, kind: input, shape index: {}]
  %s1 = inlined_call_operand.hbm [shape: f32[768,512], index: 1, kind: input, shape index: {}]
  %s2 = inlined_call_operand.hbm [shape: f32[384,768], index: 2, kind: output, shape index: {}]
  %s3 = sld [smem:[#allocation0]]
  $region73: #{tpu_custom_call.1} parent=0
    _
  %s5 = ssub.s32 1, %s3
  %s6 = scalar_select 0, %s5, %s3
  $region1: #{tpu_custom_call.1} parent=0
    #allocation4 [shape = 'u8[524288]{0}', space=vmem, size = 0x80000, scoped, tag = 'input window, operand 0']
    #allocation5 [shape = 's32[2]{0}', space=sflag, size = 0x8, scoped, tag = 'scoped memory for tpu_custom_call.1']
    #allocation6 [shape = 's32[2]{0}', space=sflag, size = 0x8, scoped, tag = 'scoped memory for tpu_custom_call.1']
    #allocation7 [shape = 'u8[1048576]{0}', space=vmem, size = 0x100000, scoped, tag = 'input window, operand 1']
    #allocation8 [shape = 's32[2]{0}', space=sflag, size = 0x8, scoped, tag = 'scoped memory for tpu_custom_call.1']
    #allocation9 [shape = 'u8[262144]{0}', space=vmem, size = 0x40000, scoped, tag = 'output window, operand 0']
    %7 = vsyncpa [#allocation5], 0
    %s8 = scalar_lea.sflag [#allocation5], 1
    %9 = vsyncpa %s8, 0
    %10 = vsyncpa [#allocation8], 0
    %s11 = scalar_lea.sflag [#allocation8], 1
    %12 = vsyncpa %s11, 0
    %13 = vsyncpa [#allocation6], 0
    %s14 = scalar_lea.sflag [#allocation6], 1
    %15 = vsyncpa %s14, 0
    loop: start=0, step=1, limit=11
    $region2: #{tpu_custom_call.1} parent=1 // loop_pre_header
      _
    $region3: #{tpu_custom_call.1} parent=1 // loop_header
      %s17 = sphi 0, %s21
      %p18 = scmp.ge.s32.totalorder %s17, 11
      %s24 = sphi 0, %s43
      %s25 = sphi 0, %s39
      %s26 = sphi 0, %s35
      %s27 = sphi 0, %s24
      %s28 = sphi 0, %s25
      %s29 = sphi 0, %s26
      %s30 = sphi 0, %s27
      %s31 = sphi 0, %s28
      %s32 = sphi 0, %s29
      %s48 = sphi 0, %s50
      %s51 = sphi 0, %s48
      %s52 = sphi 0, %s51
      %s68 = sphi 0, %s52
      %s76 = sphi 0, %s78
      %s79 = sphi 0, %s76
      %s80 = sphi 0, %s79
      %s96 = sphi 0, %s80
      %s104 = sphi 0, %s106
      %s107 = sphi 0, %s104
      %s108 = sphi 0, %s107
      %s124 = sphi 0, %s108
    $region4: #{tpu_custom_call.1} parent=1 // loop_header_branch
      %20 = sbr.rel (%p18) target = $region8
    $region5: #{tpu_custom_call.1} parent=1 // loop_body
      %s22 = ssub.s32 %s17, 1
      %s23 = ssub.s32 %s17, 2
      %s33 = sadd.s32 1, %s26
      %p34 = scmp.ge.s32.totalorder %s33, 1
      %s35 = scalar_select %p34, 0, %s33
      %s36 = sadd.s32 1, %s25
      %s37 = scalar_select %p34, %s36, %s25
      %p38 = scmp.ge.s32.totalorder %s37, 3
      %s39 = scalar_select %p38, 0, %s37
      %s40 = sadd.s32 1, %s24
      %s41 = scalar_select %p38, %s40, %s24
      %p42 = scmp.ge.s32.totalorder %s41, 3
      %s43 = scalar_select %p42, 0, %s41
      %s44 = ssub.s32 %s25, %s39
      %s45 = ssub.s32 %s26, %s35
      %s46 = sor.u32 %s44, %s45
      %p47 = scmp.eq.s32.totalorder %s46, 0
      %s49 = sadd.s32 %s48, 1
      %s50 = scalar_select %p47, %s48, %s49
      %p53 = pneg %p47
      %p54 = scmp.eq.s32.totalorder %s17, 8
      %p55 = por %p53, %p54
      %p56 = scmp.ne.s32.totalorder %s48, %s51
      %p57 = scmp.eq.s32.totalorder %s17, 0
      %p58 = por %p56, %p57
      %p59 = scmp.ne.s32.totalorder %s48, %s51
      %p60 = scmp.eq.s32.totalorder %s22, 8
      %p61 = por %p59, %p60
      %p62 = scmp.ne.s32.totalorder %s51, %s52
      %p63 = scmp.eq.s32.totalorder %s22, 0
      %p64 = por %p62, %p63
      %p65 = scmp.ne.s32.totalorder %s51, %s52
      %p66 = scmp.eq.s32.totalorder %s23, 8
      %p67 = por %p65, %p66
      %p69 = scmp.ne.s32.totalorder %s52, %s68
      %p70 = scmp.eq.s32.totalorder %s23, 0
      %p71 = por %p69, %p70
      %s72 = ssub.s32 %s24, %s43
      %s73 = ssub.s32 %s26, %s35
      %s74 = sor.u32 %s72, %s73
      %p75 = scmp.eq.s32.totalorder %s74, 0
      %s77 = sadd.s32 %s76, 1
      %s78 = scalar_select %p75, %s76, %s77
      %p81 = pneg %p75
      %p82 = scmp.eq.s32.totalorder %s17, 8
      %p83 = por %p81, %p82
      %p84 = scmp.ne.s32.totalorder %s76, %s79
      %p85 = scmp.eq.s32.totalorder %s17, 0
      %p86 = por %p84, %p85
      %p87 = scmp.ne.s32.totalorder %s76, %s79
      %p88 = scmp.eq.s32.totalorder %s22, 8
      %p89 = por %p87, %p88
      %p90 = scmp.ne.s32.totalorder %s79, %s80
      %p91 = scmp.eq.s32.totalorder %s22, 0
      %p92 = por %p90, %p91
      %p93 = scmp.ne.s32.totalorder %s79, %s80
      %p94 = scmp.eq.s32.totalorder %s23, 8
      %p95 = por %p93, %p94
      %p97 = scmp.ne.s32.totalorder %s80, %s96
      %p98 = scmp.eq.s32.totalorder %s23, 0
      %p99 = por %p97, %p98
      %s100 = ssub.s32 %s25, %s39
      %s101 = ssub.s32 %s24, %s43
      %s102 = sor.u32 %s100, %s101
      %p103 = scmp.eq.s32.totalorder %s102, 0
      %s105 = sadd.s32 %s104, 1
      %s106 = scalar_select %p103, %s104, %s105
      %p109 = pneg %p103
      %p110 = scmp.eq.s32.totalorder %s17, 8
      %p111 = por %p109, %p110
      %p112 = scmp.ne.s32.totalorder %s104, %s107
      %p113 = scmp.eq.s32.totalorder %s17, 0
      %p114 = por %p112, %p113
      %p115 = scmp.ne.s32.totalorder %s104, %s107
      %p116 = scmp.eq.s32.totalorder %s22, 8
      %p117 = por %p115, %p116
      %p118 = scmp.ne.s32.totalorder %s107, %s108
      %p119 = scmp.eq.s32.totalorder %s22, 0
      %p120 = por %p118, %p119
      %p121 = scmp.ne.s32.totalorder %s107, %s108
      %p122 = scmp.eq.s32.totalorder %s23, 8
      %p123 = por %p121, %p122
      %p125 = scmp.ne.s32.totalorder %s108, %s124
      %p126 = scmp.eq.s32.totalorder %s23, 0
      %p127 = por %p125, %p126
      %p128 = scmp.le.s32.totalorder 1, %s17
      %p129 = scmp.lt.s32.totalorder %s17, 10
      %p130 = pnand %p128, %p129
      %p131 = pneg %p130
      // Predicated region
      $region9: #{tpu_custom_call.1} parent=5 // pred_check
        _
      $region10: #{tpu_custom_call.1} parent=5 // pred_check_branch
        %133 = sbr.rel (%p130) target = $region12
      $region11: #{tpu_custom_call.1} parent=5 // pred_region
        %s134 = ssub.s32 %s17, 1
      $region12: #{tpu_custom_call.1} parent=5 // pred_fallthru
        _
      %p135 = scmp.lt.s32.totalorder %s17, 9
      // Predicated region
      $region13: #{tpu_custom_call.1} parent=5 // pred_check
        %p136 = pneg %p135
      $region14: #{tpu_custom_call.1} parent=5 // pred_check_branch
        %138 = sbr.rel (%p136) target = $region16
      $region15: #{tpu_custom_call.1} parent=5 // pred_region
        // Predicated region
        $region17: #{tpu_custom_call.1} parent=15 // pred_check
          %p139 = pneg %p58
        $region18: #{tpu_custom_call.1} parent=15 // pred_check_branch
          %141 = sbr.rel (%p139) target = $region20
        $region19: #{tpu_custom_call.1} parent=15 // pred_region
          %s142 = sand.u32 %s48, 1
          %s143 = scalar_lea.sflag [#allocation5], %s142
          %s144 = sand.u32 %s48, 1
          %s145 = smul.addr %s144, 512
          %s146 = scalar_lea.vmem [#allocation4], %s145
          %s147 = smul.u32 16, %s25
          %s148 = smul.u32 4, %s26
          %s150 = ssub.s32 8192, 8192
          %151 = vsyncadd %s143, %s150
          %s152 = smul.addr %s147, 4
          %s153 = sadd.s32 %s148, %s152
          %s154 = smul.addr %s153, 128
          %s155 = scalar_lea.hbm %s0, %s154
          %s156 = sshll.u32 %s146, 4
          %s157 = int_to_ptr.vmem [resolvable:$true] %s156
          %162 = dma.hbm_to_vmem [thread:$0]  %s155, 8192, %s157, %s143, 512, 512, 32
        $region20: #{tpu_custom_call.1} parent=15 // pred_fallthru
          _
        // Predicated region
        $region21: #{tpu_custom_call.1} parent=15 // pred_check
          %p163 = pneg %p86
        $region22: #{tpu_custom_call.1} parent=15 // pred_check_branch
          %165 = sbr.rel (%p163) target = $region24
        $region23: #{tpu_custom_call.1} parent=15 // pred_region
          %s166 = sand.u32 %s76, 1
          %s167 = scalar_lea.sflag [#allocation8], %s166
          %s168 = sand.u32 %s76, 1
          %s169 = smul.addr %s168, 1024
          %s170 = scalar_lea.vmem [#allocation7], %s169
          %s171 = smul.u32 32, %s24
          %s172 = smul.u32 4, %s26
          %s174 = ssub.s32 16384, 16384
          %175 = vsyncadd %s167, %s174
          %s176 = smul.addr %s171, 4
          %s177 = sadd.s32 %s172, %s176
          %s178 = smul.addr %s177, 128
          %s179 = scalar_lea.hbm %s1, %s178
          %s180 = sshll.u32 %s170, 4
          %s181 = int_to_ptr.vmem [resolvable:$true] %s180
          %186 = dma.hbm_to_vmem [thread:$0]  %s179, 16384, %s181, %s167, 512, 512, 32
        $region24: #{tpu_custom_call.1} parent=15 // pred_fallthru
          _
      $region16: #{tpu_custom_call.1} parent=5 // pred_fallthru
        _
      %p187 = scmp.le.s32.totalorder 1, %s17
      %p188 = scmp.lt.s32.totalorder %s17, 10
      %p189 = pnand %p187, %p188
      %p190 = pneg %p189
      // Predicated region
      $region25: #{tpu_custom_call.1} parent=5 // pred_check
        _
      $region26: #{tpu_custom_call.1} parent=5 // pred_check_branch
        %192 = sbr.rel (%p189) target = $region28
      $region27: #{tpu_custom_call.1} parent=5 // pred_region
        %s193 = ssub.s32 %s17, 1
        %s194 = sand.u32 %s51, 1
        %s195 = scalar_lea.sflag [#allocation5], %s194
        %s196 = sand.u32 %s51, 1
        %s197 = smul.addr %s196, 512
        %s198 = scalar_lea.vmem [#allocation4], %s197
        // Predicated region
        $region29: #{tpu_custom_call.1} parent=27 // pred_check
          %p199 = pneg %p64
        $region30: #{tpu_custom_call.1} parent=27 // pred_check_branch
          %201 = sbr.rel (%p199) target = $region32
        $region31: #{tpu_custom_call.1} parent=27 // pred_region
          %202 = dma.done %s195, 8192
        $region32: #{tpu_custom_call.1} parent=27 // pred_fallthru
          _
        %s203 = sand.u32 %s79, 1
        %s204 = scalar_lea.sflag [#allocation8], %s203
        %s205 = sand.u32 %s79, 1
        %s206 = smul.addr %s205, 1024
        %s207 = scalar_lea.vmem [#allocation7], %s206
        // Predicated region
        $region33: #{tpu_custom_call.1} parent=27 // pred_check
          %p208 = pneg %p92
        $region34: #{tpu_custom_call.1} parent=27 // pred_check_branch
          %210 = sbr.rel (%p208) target = $region36
        $region35: #{tpu_custom_call.1} parent=27 // pred_region
          %211 = dma.done %s204, 16384
        $region36: #{tpu_custom_call.1} parent=27 // pred_fallthru
          _
        %s212 = sand.u32 %s51, 1
        %s213 = scalar_lea.sflag [#allocation5], %s212
        %s214 = sand.u32 %s51, 1
        %s215 = smul.addr %s214, 512
        %s216 = scalar_lea.vmem [#allocation4], %s215
        %p217 = pneg %p64
        %p218 = pneg %p61
        %s219 = sand.u32 %s79, 1
        %s220 = scalar_lea.sflag [#allocation8], %s219
        %s221 = sand.u32 %s79, 1
        %s222 = smul.addr %s221, 1024
        %s223 = scalar_lea.vmem [#allocation7], %s222
        %p224 = pneg %p92
        %p225 = pneg %p89
        %p226 = pneg %p120
        %p227 = pneg %p117
        %s228 = sand.u32 %s107, 1
        %s229 = scalar_lea.sflag [#allocation6], %s228
        %s230 = sand.u32 %s107, 1
        %s231 = smul.addr %s230, 256
        %s232 = scalar_lea.vmem [#allocation9], %s231
        %s233 = smul.u32 16, %s28
        %s234 = smul.u32 4, %s29
        %s235 = smul.u32 32, %s27
        %s236 = smul.u32 4, %s29
        %s237 = smul.u32 16, %s28
        %s238 = smul.u32 2, %s27
        %p239 = scmp.eq.s32.totalorder %s28, 0
        %p240 = scmp.eq.s32.totalorder %s29, 0
        %p241 = pnand %p239, %p240
        %p242 = pneg %p241
        // Predicated region
        $region37: #{tpu_custom_call.1} parent=27 // pred_check
          _
        $region38: #{tpu_custom_call.1} parent=27 // pred_check_branch
          %244 = sbr.rel (%p241) target = $region40
        $region39: #{tpu_custom_call.1} parent=27 // pred_region
          %v245 = vlaneseq
          %vm246 = vcmp.ge.s32.totalorder %v245, 0
          %vm247 = vcmp.lt.s32.totalorder %v245, 256
          %vm248 = vmand %vm246, %vm247
          %249 = vst.msk [vmem:[#allocation2] sm:$0x3] %vm248, 0.0
        $region40: #{tpu_custom_call.1} parent=27 // pred_fallthru
          _
        // Predicated region
        $region41: #{tpu_custom_call.1} parent=27 // pred_check
          %p250 = pneg %p239
        $region42: #{tpu_custom_call.1} parent=27 // pred_check_branch
          %252 = sbr.rel (%p250) target = $region44
        $region43: #{tpu_custom_call.1} parent=27 // pred_region
          %v253 = vld [vmem:[%s207] sm:$0xff]
          %v254 = vld [vmem:[%s207 + $0x8] sm:$0xff]
          %v255 = vld [vmem:[%s207 + $0x10] sm:$0xff]
          %v256 = vld [vmem:[%s207 + $0x18] sm:$0xff]
          %v257 = vld [vmem:[%s207 + $0x20] sm:$0xff]
          %v258 = vld [vmem:[%s207 + $0x28] sm:$0xff]
          %v259 = vld [vmem:[%s207 + $0x30] sm:$0xff]
          %v260 = vld [vmem:[%s207 + $0x38] sm:$0xff]
          %v261 = vld [vmem:[%s207 + $0x40] sm:$0xff]
          %v262 = vld [vmem:[%s207 + $0x48] sm:$0xff]
          %v263 = vld [vmem:[%s207 + $0x50] sm:$0xff]
          %v264 = vld [vmem:[%s207 + $0x58] sm:$0xff]
          %v265 = vld [vmem:[%s207 + $0x60] sm:$0xff]
          %v266 = vld [vmem:[%s207 + $0x68] sm:$0xff]
          %v267 = vld [vmem:[%s207 + $0x70] sm:$0xff]
          %v268 = vld [vmem:[%s207 + $0x78] sm:$0xff]
          %v269 = vld [vmem:[%s207 + $0x80] sm:$0xff]
          %v270 = vld [vmem:[%s207 + $0x88] sm:$0xff]
          %v271 = vld [vmem:[%s207 + $0x90] sm:$0xff]
          %v272 = vld [vmem:[%s207 + $0x98] sm:$0xff]
          %v273 = vld [vmem:[%s207 + $0xa0] sm:$0xff]
          %v274 = vld [vmem:[%s207 + $0xa8] sm:$0xff]
          %v275 = vld [vmem:[%s207 + $0xb0] sm:$0xff]
          %v276 = vld [vmem:[%s207 + $0xb8] sm:$0xff]
          %v277 = vld [vmem:[%s207 + $0xc0] sm:$0xff]
          %v278 = vld [vmem:[%s207 + $0xc8] sm:$0xff]
          %v279 = vld [vmem:[%s207 + $0xd0] sm:$0xff]
          %v280 = vld [vmem:[%s207 + $0xd8] sm:$0xff]
          %v281 = vld [vmem:[%s207 + $0xe0] sm:$0xff]
          %v282 = vld [vmem:[%s207 + $0xe8] sm:$0xff]
          %v283 = vld [vmem:[%s207 + $0xf0] sm:$0xff]
          %v284 = vld [vmem:[%s207 + $0xf8] sm:$0xff]
          %v285 = vld [vmem:[%s207 + $0x100] sm:$0xff]
          %v286 = vld [vmem:[%s207 + $0x108] sm:$0xff]
          %v287 = vld [vmem:[%s207 + $0x110] sm:$0xff]
          %v288 = vld [vmem:[%s207 + $0x118] sm:$0xff]
          %v289 = vld [vmem:[%s207 + $0x120] sm:$0xff]
          %v290 = vld [vmem:[%s207 + $0x128] sm:$0xff]
          %v291 = vld [vmem:[%s207 + $0x130] sm:$0xff]
          %v292 = vld [vmem:[%s207 + $0x138] sm:$0xff]
          %v293 = vld [vmem:[%s207 + $0x140] sm:$0xff]
          %v294 = vld [vmem:[%s207 + $0x148] sm:$0xff]
          %v295 = vld [vmem:[%s207 + $0x150] sm:$0xff]
          %v296 = vld [vmem:[%s207 + $0x158] sm:$0xff]
          %v297 = vld [vmem:[%s207 + $0x160] sm:$0xff]
          %v298 = vld [vmem:[%s207 + $0x168] sm:$0xff]
          %v299 = vld [vmem:[%s207 + $0x170] sm:$0xff]
          %v300 = vld [vmem:[%s207 + $0x178] sm:$0xff]
          %v301 = vld [vmem:[%s207 + $0x180] sm:$0xff]
          %v302 = vld [vmem:[%s207 + $0x188] sm:$0xff]
          %v303 = vld [vmem:[%s207 + $0x190] sm:$0xff]
          %v304 = vld [vmem:[%s207 + $0x198] sm:$0xff]
          %v305 = vld [vmem:[%s207 + $0x1a0] sm:$0xff]
          %v306 = vld [vmem:[%s207 + $0x1a8] sm:$0xff]
          %v307 = vld [vmem:[%s207 + $0x1b0] sm:$0xff]
          %v308 = vld [vmem:[%s207 + $0x1b8] sm:$0xff]
          %v309 = vld [vmem:[%s207 + $0x1c0] sm:$0xff]
          %v310 = vld [vmem:[%s207 + $0x1c8] sm:$0xff]
          %v311 = vld [vmem:[%s207 + $0x1d0] sm:$0xff]
          %v312 = vld [vmem:[%s207 + $0x1d8] sm:$0xff]
          %v313 = vld [vmem:[%s207 + $0x1e0] sm:$0xff]
          %v314 = vld [vmem:[%s207 + $0x1e8] sm:$0xff]
          %v315 = vld [vmem:[%s207 + $0x1f0] sm:$0xff]
          %v316 = vld [vmem:[%s207 + $0x1f8] sm:$0xff]
          %v317 = vld [vmem:[%s207 + $0x200] sm:$0xff]
          %v318 = vld [vmem:[%s207 + $0x208] sm:$0xff]
          %v319 = vld [vmem:[%s207 + $0x210] sm:$0xff]
          %v320 = vld [vmem:[%s207 + $0x218] sm:$0xff]
          %v321 = vld [vmem:[%s207 + $0x220] sm:$0xff]
          %v322 = vld [vmem:[%s207 + $0x228] sm:$0xff]
          %v323 = vld [vmem:[%s207 + $0x230] sm:$0xff]
          %v324 = vld [vmem:[%s207 + $0x238] sm:$0xff]
          %v325 = vld [vmem:[%s207 + $0x240] sm:$0xff]
          %v326 = vld [vmem:[%s207 + $0x248] sm:$0xff]
          %v327 = vld [vmem:[%s207 + $0x250] sm:$0xff]
          %v328 = vld [vmem:[%s207 + $0x258] sm:$0xff]
          %v329 = vld [vmem:[%s207 + $0x260] sm:$0xff]
          %v330 = vld [vmem:[%s207 + $0x268] sm:$0xff]
          %v331 = vld [vmem:[%s207 + $0x270] sm:$0xff]
          %v332 = vld [vmem:[%s207 + $0x278] sm:$0xff]
          %v333 = vld [vmem:[%s207 + $0x280] sm:$0xff]
          %v334 = vld [vmem:[%s207 + $0x288] sm:$0xff]
          %v335 = vld [vmem:[%s207 + $0x290] sm:$0xff]
          %v336 = vld [vmem:[%s207 + $0x298] sm:$0xff]
          %v337 = vld [vmem:[%s207 + $0x2a0] sm:$0xff]
          %v338 = vld [vmem:[%s207 + $0x2a8] sm:$0xff]
          %v339 = vld [vmem:[%s207 + $0x2b0] sm:$0xff]
          %v340 = vld [vmem:[%s207 + $0x2b8] sm:$0xff]
          %v341 = vld [vmem:[%s207 + $0x2c0] sm:$0xff]
          %v342 = vld [vmem:[%s207 + $0x2c8] sm:$0xff]
          %v343 = vld [vmem:[%s207 + $0x2d0] sm:$0xff]
          %v344 = vld [vmem:[%s207 + $0x2d8] sm:$0xff]
          %v345 = vld [vmem:[%s207 + $0x2e0] sm:$0xff]
          %v346 = vld [vmem:[%s207 + $0x2e8] sm:$0xff]
          %v347 = vld [vmem:[%s207 + $0x2f0] sm:$0xff]
          %v348 = vld [vmem:[%s207 + $0x2f8] sm:$0xff]
          %v349 = vld [vmem:[%s207 + $0x300] sm:$0xff]
          %v350 = vld [vmem:[%s207 + $0x308] sm:$0xff]
          %v351 = vld [vmem:[%s207 + $0x310] sm:$0xff]
          %v352 = vld [vmem:[%s207 + $0x318] sm:$0xff]
          %v353 = vld [vmem:[%s207 + $0x320] sm:$0xff]
          %v354 = vld [vmem:[%s207 + $0x328] sm:$0xff]
          %v355 = vld [vmem:[%s207 + $0x330] sm:$0xff]
          %v356 = vld [vmem:[%s207 + $0x338] sm:$0xff]
          %v357 = vld [vmem:[%s207 + $0x340] sm:$0xff]
          %v358 = vld [vmem:[%s207 + $0x348] sm:$0xff]
          %v359 = vld [vmem:[%s207 + $0x350] sm:$0xff]
          %v360 = vld [vmem:[%s207 + $0x358] sm:$0xff]
          %v361 = vld [vmem:[%s207 + $0x360] sm:$0xff]
          %v362 = vld [vmem:[%s207 + $0x368] sm:$0xff]
          %v363 = vld [vmem:[%s207 + $0x370] sm:$0xff]
          %v364 = vld [vmem:[%s207 + $0x378] sm:$0xff]
          %v365 = vld [vmem:[%s207 + $0x380] sm:$0xff]
          %v366 = vld [vmem:[%s207 + $0x388] sm:$0xff]
          %v367 = vld [vmem:[%s207 + $0x390] sm:$0xff]
          %v368 = vld [vmem:[%s207 + $0x398] sm:$0xff]
          %v369 = vld [vmem:[%s207 + $0x3a0] sm:$0xff]
          %v370 = vld [vmem:[%s207 + $0x3a8] sm:$0xff]
          %v371 = vld [vmem:[%s207 + $0x3b0] sm:$0xff]
          %v372 = vld [vmem:[%s207 + $0x3b8] sm:$0xff]
          %v373 = vld [vmem:[%s207 + $0x3c0] sm:$0xff]
          %v374 = vld [vmem:[%s207 + $0x3c8] sm:$0xff]
          %v375 = vld [vmem:[%s207 + $0x3d0] sm:$0xff]
          %v376 = vld [vmem:[%s207 + $0x3d8] sm:$0xff]
          %v377 = vld [vmem:[%s207 + $0x3e0] sm:$0xff]
          %v378 = vld [vmem:[%s207 + $0x3e8] sm:$0xff]
          %v379 = vld [vmem:[%s207 + $0x3f0] sm:$0xff]
          %v380 = vld [vmem:[%s207 + $0x3f8] sm:$0xff]
          %v381 = vld [vmem:[#allocation2] sm:$0x3]
          %v382 = vmul.f32 %v253, %v253
          %v383 = vmul.f32 %v254, %v254
          %v384 = vmul.f32 %v255, %v255
          %v385 = vmul.f32 %v256, %v256
          %v386 = vmul.f32 %v257, %v257
          %v387 = vmul.f32 %v258, %v258
          %v388 = vmul.f32 %v259, %v259
          %v389 = vmul.f32 %v260, %v260
          %v390 = vmul.f32 %v261, %v261
          %v391 = vmul.f32 %v262, %v262
          %v392 = vmul.f32 %v263, %v263
          %v393 = vmul.f32 %v264, %v264
          %v394 = vmul.f32 %v265, %v265
          %v395 = vmul.f32 %v266, %v266
          %v396 = vmul.f32 %v267, %v267
          %v397 = vmul.f32 %v268, %v268
          %v398 = vmul.f32 %v269, %v269
          %v399 = vmul.f32 %v270, %v270
          %v400 = vmul.f32 %v271, %v271
          %v401 = vmul.f32 %v272, %v272
          %v402 = vmul.f32 %v273, %v273
          %v403 = vmul.f32 %v274, %v274
          %v404 = vmul.f32 %v275, %v275
          %v405 = vmul.f32 %v276, %v276
          %v406 = vmul.f32 %v277, %v277
          %v407 = vmul.f32 %v278, %v278
          %v408 = vmul.f32 %v279, %v279
          %v409 = vmul.f32 %v280, %v280
          %v410 = vmul.f32 %v281, %v281
          %v411 = vmul.f32 %v282, %v282
          %v412 = vmul.f32 %v283, %v283
          %v413 = vmul.f32 %v284, %v284
          %v414 = vmul.f32 %v285, %v285
          %v415 = vmul.f32 %v286, %v286
          %v416 = vmul.f32 %v287, %v287
          %v417 = vmul.f32 %v288, %v288
          %v418 = vmul.f32 %v289, %v289
          %v419 = vmul.f32 %v290, %v290
          %v420 = vmul.f32 %v291, %v291
          %v421 = vmul.f32 %v292, %v292
          %v422 = vmul.f32 %v293, %v293
          %v423 = vmul.f32 %v294, %v294
          %v424 = vmul.f32 %v295, %v295
          %v425 = vmul.f32 %v296, %v296
          %v426 = vmul.f32 %v297, %v297
          %v427 = vmul.f32 %v298, %v298
          %v428 = vmul.f32 %v299, %v299
          %v429 = vmul.f32 %v300, %v300
          %v430 = vmul.f32 %v301, %v301
          %v431 = vmul.f32 %v302, %v302
          %v432 = vmul.f32 %v303, %v303
          %v433 = vmul.f32 %v304, %v304
          %v434 = vmul.f32 %v305, %v305
          %v435 = vmul.f32 %v306, %v306
          %v436 = vmul.f32 %v307, %v307
          %v437 = vmul.f32 %v308, %v308
          %v438 = vmul.f32 %v309, %v309
          %v439 = vmul.f32 %v310, %v310
          %v440 = vmul.f32 %v311, %v311
          %v441 = vmul.f32 %v312, %v312
          %v442 = vmul.f32 %v313, %v313
          %v443 = vmul.f32 %v314, %v314
          %v444 = vmul.f32 %v315, %v315
          %v445 = vmul.f32 %v316, %v316
          %v446 = vmul.f32 %v317, %v317
          %v447 = vmul.f32 %v318, %v318
          %v448 = vmul.f32 %v319, %v319
          %v449 = vmul.f32 %v320, %v320
          %v450 = vmul.f32 %v321, %v321
          %v451 = vmul.f32 %v322, %v322
          %v452 = vmul.f32 %v323, %v323
          %v453 = vmul.f32 %v324, %v324
          %v454 = vmul.f32 %v325, %v325
          %v455 = vmul.f32 %v326, %v326
          %v456 = vmul.f32 %v327, %v327
          %v457 = vmul.f32 %v328, %v328
          %v458 = vmul.f32 %v329, %v329
          %v459 = vmul.f32 %v330, %v330
          %v460 = vmul.f32 %v331, %v331
          %v461 = vmul.f32 %v332, %v332
          %v462 = vmul.f32 %v333, %v333
          %v463 = vmul.f32 %v334, %v334
          %v464 = vmul.f32 %v335, %v335
          %v465 = vmul.f32 %v336, %v336
          %v466 = vmul.f32 %v337, %v337
          %v467 = vmul.f32 %v338, %v338
          %v468 = vmul.f32 %v339, %v339
          %v469 = vmul.f32 %v340, %v340
          %v470 = vmul.f32 %v341, %v341
          %v471 = vmul.f32 %v342, %v342
          %v472 = vmul.f32 %v343, %v343
          %v473 = vmul.f32 %v344, %v344
          %v474 = vmul.f32 %v345, %v345
          %v475 = vmul.f32 %v346, %v346
          %v476 = vmul.f32 %v347, %v347
          %v477 = vmul.f32 %v348, %v348
          %v478 = vmul.f32 %v349, %v349
          %v479 = vmul.f32 %v350, %v350
          %v480 = vmul.f32 %v351, %v351
          %v481 = vmul.f32 %v352, %v352
          %v482 = vmul.f32 %v353, %v353
          %v483 = vmul.f32 %v354, %v354
          %v484 = vmul.f32 %v355, %v355
          %v485 = vmul.f32 %v356, %v356
          %v486 = vmul.f32 %v357, %v357
          %v487 = vmul.f32 %v358, %v358
          %v488 = vmul.f32 %v359, %v359
          %v489 = vmul.f32 %v360, %v360
          %v490 = vmul.f32 %v361, %v361
          %v491 = vmul.f32 %v362, %v362
          %v492 = vmul.f32 %v363, %v363
          %v493 = vmul.f32 %v364, %v364
          %v494 = vmul.f32 %v365, %v365
          %v495 = vmul.f32 %v366, %v366
          %v496 = vmul.f32 %v367, %v367
          %v497 = vmul.f32 %v368, %v368
          %v498 = vmul.f32 %v369, %v369
          %v499 = vmul.f32 %v370, %v370
          %v500 = vmul.f32 %v371, %v371
          %v501 = vmul.f32 %v372, %v372
          %v502 = vmul.f32 %v373, %v373
          %v503 = vmul.f32 %v374, %v374
          %v504 = vmul.f32 %v375, %v375
          %v505 = vmul.f32 %v376, %v376
          %v506 = vmul.f32 %v377, %v377
          %v507 = vmul.f32 %v378, %v378
          %v508 = vmul.f32 %v379, %v379
          %v509 = vmul.f32 %v380, %v380
          %v510 = vadd.f32 %v382, %v383
          %v511 = vadd.f32 %v510, %v384
          %v512 = vadd.f32 %v511, %v385
          %513 = vadd.xlane.f32.xlu0 %v512
          %v514 = vpop.xlane.xlu0 %513
          %v515 = vadd.f32 %v386, %v387
          %v516 = vadd.f32 %v515, %v388
          %v517 = vadd.f32 %v516, %v389
          %518 = vadd.xlane.f32.xlu0 %v517
          %v519 = vpop.xlane.xlu0 %518
          %v520 = vadd.f32 %v390, %v391
          %v521 = vadd.f32 %v520, %v392
          %v522 = vadd.f32 %v521, %v393
          %523 = vadd.xlane.f32.xlu0 %v522
          %v524 = vpop.xlane.xlu0 %523
          %v525 = vadd.f32 %v394, %v395
          %v526 = vadd.f32 %v525, %v396
          %v527 = vadd.f32 %v526, %v397
          %528 = vadd.xlane.f32.xlu0 %v527
          %v529 = vpop.xlane.xlu0 %528
          %v530 = vadd.f32 %v398, %v399
          %v531 = vadd.f32 %v530, %v400
          %v532 = vadd.f32 %v531, %v401
          %533 = vadd.xlane.f32.xlu0 %v532
          %v534 = vpop.xlane.xlu0 %533
          %v535 = vadd.f32 %v402, %v403
          %v536 = vadd.f32 %v535, %v404
          %v537 = vadd.f32 %v536, %v405
          %538 = vadd.xlane.f32.xlu0 %v537
          %v539 = vpop.xlane.xlu0 %538
          %v540 = vadd.f32 %v406, %v407
          %v541 = vadd.f32 %v540, %v408
          %v542 = vadd.f32 %v541, %v409
          %543 = vadd.xlane.f32.xlu0 %v542
          %v544 = vpop.xlane.xlu0 %543
          %v545 = vadd.f32 %v410, %v411
          %v546 = vadd.f32 %v545, %v412
          %v547 = vadd.f32 %v546, %v413
          %548 = vadd.xlane.f32.xlu0 %v547
          %v549 = vpop.xlane.xlu0 %548
          %v550 = vadd.f32 %v414, %v415
          %v551 = vadd.f32 %v550, %v416
          %v552 = vadd.f32 %v551, %v417
          %553 = vadd.xlane.f32.xlu0 %v552
          %v554 = vpop.xlane.xlu0 %553
          %v555 = vadd.f32 %v418, %v419
          %v556 = vadd.f32 %v555, %v420
          %v557 = vadd.f32 %v556, %v421
          %558 = vadd.xlane.f32.xlu0 %v557
          %v559 = vpop.xlane.xlu0 %558
          %v560 = vadd.f32 %v422, %v423
          %v561 = vadd.f32 %v560, %v424
          %v562 = vadd.f32 %v561, %v425
          %563 = vadd.xlane.f32.xlu0 %v562
          %v564 = vpop.xlane.xlu0 %563
          %v565 = vadd.f32 %v426, %v427
          %v566 = vadd.f32 %v565, %v428
          %v567 = vadd.f32 %v566, %v429
          %568 = vadd.xlane.f32.xlu0 %v567
          %v569 = vpop.xlane.xlu0 %568
          %v570 = vadd.f32 %v430, %v431
          %v571 = vadd.f32 %v570, %v432
          %v572 = vadd.f32 %v571, %v433
          %573 = vadd.xlane.f32.xlu0 %v572
          %v574 = vpop.xlane.xlu0 %573
          %v575 = vadd.f32 %v434, %v435
          %v576 = vadd.f32 %v575, %v436
          %v577 = vadd.f32 %v576, %v437
          %578 = vadd.xlane.f32.xlu0 %v577
          %v579 = vpop.xlane.xlu0 %578
          %v580 = vadd.f32 %v438, %v439
          %v581 = vadd.f32 %v580, %v440
          %v582 = vadd.f32 %v581, %v441
          %583 = vadd.xlane.f32.xlu0 %v582
          %v584 = vpop.xlane.xlu0 %583
          %v585 = vadd.f32 %v442, %v443
          %v586 = vadd.f32 %v585, %v444
          %v587 = vadd.f32 %v586, %v445
          %588 = vadd.xlane.f32.xlu0 %v587
          %v589 = vpop.xlane.xlu0 %588
          %v590 = vadd.f32 %v446, %v447
          %v591 = vadd.f32 %v590, %v448
          %v592 = vadd.f32 %v591, %v449
          %593 = vadd.xlane.f32.xlu0 %v592
          %v594 = vpop.xlane.xlu0 %593
          %v595 = vadd.f32 %v450, %v451
          %v596 = vadd.f32 %v595, %v452
          %v597 = vadd.f32 %v596, %v453
          %598 = vadd.xlane.f32.xlu0 %v597
          %v599 = vpop.xlane.xlu0 %598
          %v600 = vadd.f32 %v454, %v455
          %v601 = vadd.f32 %v600, %v456
          %v602 = vadd.f32 %v601, %v457
          %603 = vadd.xlane.f32.xlu0 %v602
          %v604 = vpop.xlane.xlu0 %603
          %v605 = vadd.f32 %v458, %v459
          %v606 = vadd.f32 %v605, %v460
          %v607 = vadd.f32 %v606, %v461
          %608 = vadd.xlane.f32.xlu0 %v607
          %v609 = vpop.xlane.xlu0 %608
          %v610 = vadd.f32 %v462, %v463
          %v611 = vadd.f32 %v610, %v464
          %v612 = vadd.f32 %v611, %v465
          %613 = vadd.xlane.f32.xlu0 %v612
          %v614 = vpop.xlane.xlu0 %613
          %v615 = vadd.f32 %v466, %v467
          %v616 = vadd.f32 %v615, %v468
          %v617 = vadd.f32 %v616, %v469
          %618 = vadd.xlane.f32.xlu0 %v617
          %v619 = vpop.xlane.xlu0 %618
          %v620 = vadd.f32 %v470, %v471
          %v621 = vadd.f32 %v620, %v472
          %v622 = vadd.f32 %v621, %v473
          %623 = vadd.xlane.f32.xlu0 %v622
          %v624 = vpop.xlane.xlu0 %623
          %v625 = vadd.f32 %v474, %v475
          %v626 = vadd.f32 %v625, %v476
          %v627 = vadd.f32 %v626, %v477
          %628 = vadd.xlane.f32.xlu0 %v627
          %v629 = vpop.xlane.xlu0 %628
          %v630 = vadd.f32 %v478, %v479
          %v631 = vadd.f32 %v630, %v480
          %v632 = vadd.f32 %v631, %v481
          %633 = vadd.xlane.f32.xlu0 %v632
          %v634 = vpop.xlane.xlu0 %633
          %v635 = vadd.f32 %v482, %v483
          %v636 = vadd.f32 %v635, %v484
          %v637 = vadd.f32 %v636, %v485
          %638 = vadd.xlane.f32.xlu0 %v637
          %v639 = vpop.xlane.xlu0 %638
          %v640 = vadd.f32 %v486, %v487
          %v641 = vadd.f32 %v640, %v488
          %v642 = vadd.f32 %v641, %v489
          %643 = vadd.xlane.f32.xlu0 %v642
          %v644 = vpop.xlane.xlu0 %643
          %v645 = vadd.f32 %v490, %v491
          %v646 = vadd.f32 %v645, %v492
          %v647 = vadd.f32 %v646, %v493
          %648 = vadd.xlane.f32.xlu0 %v647
          %v649 = vpop.xlane.xlu0 %648
          %v650 = vadd.f32 %v494, %v495
          %v651 = vadd.f32 %v650, %v496
          %v652 = vadd.f32 %v651, %v497
          %653 = vadd.xlane.f32.xlu0 %v652
          %v654 = vpop.xlane.xlu0 %653
          %v655 = vadd.f32 %v498, %v499
          %v656 = vadd.f32 %v655, %v500
          %v657 = vadd.f32 %v656, %v501
          %658 = vadd.xlane.f32.xlu0 %v657
          %v659 = vpop.xlane.xlu0 %658
          %v660 = vadd.f32 %v502, %v503
          %v661 = vadd.f32 %v660, %v504
          %v662 = vadd.f32 %v661, %v505
          %663 = vadd.xlane.f32.xlu0 %v662
          %v664 = vpop.xlane.xlu0 %663
          %v665 = vadd.f32 %v506, %v507
          %v666 = vadd.f32 %v665, %v508
          %v667 = vadd.f32 %v666, %v509
          %668 = vadd.xlane.f32.xlu0 %v667
          %v669 = vpop.xlane.xlu0 %668
          %670 = vxpose.xlu0.b32.start [1/16] %v514, 128
          %671 = vxpose.xlu0.b32.cont [2/16] %v519, 128
          %672 = vxpose.xlu0.b32.cont [3/16] %v524, 128
          %673 = vxpose.xlu0.b32.cont [4/16] %v529, 128
          %674 = vxpose.xlu0.b32.cont [5/16] %v534, 128
          %675 = vxpose.xlu0.b32.cont [6/16] %v539, 128
          %676 = vxpose.xlu0.b32.cont [7/16] %v544, 128
          %677 = vxpose.xlu0.b32.cont [8/16] %v549, 128
          %678 = vxpose.xlu0.b32.cont [9/16] %v554, 128
          %679 = vxpose.xlu0.b32.cont [10/16] %v559, 128
          %680 = vxpose.xlu0.b32.cont [11/16] %v564, 128
          %681 = vxpose.xlu0.b32.cont [12/16] %v569, 128
          %682 = vxpose.xlu0.b32.cont [13/16] %v574, 128
          %683 = vxpose.xlu0.b32.cont [14/16] %v579, 128
          %684 = vxpose.xlu0.b32.cont [15/16] %v584, 128
          %685 = vxpose.xlu0.b32.end [16/16] %v589, 128
          %v686 = vpop.trf.xlu0
          %v687 = vpop.trf.xlu0
          %v688 = vpop.trf.xlu0
          %v689 = vpop.trf.xlu0
          %v690 = vpop.trf.xlu0
          %v691 = vpop.trf.xlu0
          %v692 = vpop.trf.xlu0
          %v693 = vpop.trf.xlu0
          %v694 = vpop.trf.xlu0
          %v695 = vpop.trf.xlu0
          %v696 = vpop.trf.xlu0
          %v697 = vpop.trf.xlu0
          %v698 = vpop.trf.xlu0
          %v699 = vpop.trf.xlu0
          %v700 = vpop.trf.xlu0
          %v701 = vpop.trf.xlu0
          %702 = vxpose.xlu0.b32.start [1/16] %v594, 128
          %703 = vxpose.xlu0.b32.cont [2/16] %v599, 128
          %704 = vxpose.xlu0.b32.cont [3/16] %v604, 128
          %705 = vxpose.xlu0.b32.cont [4/16] %v609, 128
          %706 = vxpose.xlu0.b32.cont [5/16] %v614, 128
          %707 = vxpose.xlu0.b32.cont [6/16] %v619, 128
          %708 = vxpose.xlu0.b32.cont [7/16] %v624, 128
          %709 = vxpose.xlu0.b32.cont [8/16] %v629, 128
          %710 = vxpose.xlu0.b32.cont [9/16] %v634, 128
          %711 = vxpose.xlu0.b32.cont [10/16] %v639, 128
          %712 = vxpose.xlu0.b32.cont [11/16] %v644, 128
          %713 = vxpose.xlu0.b32.cont [12/16] %v649, 128
          %714 = vxpose.xlu0.b32.cont [13/16] %v654, 128
          %715 = vxpose.xlu0.b32.cont [14/16] %v659, 128
          %716 = vxpose.xlu0.b32.cont [15/16] %v664, 128
          %717 = vxpose.xlu0.b32.end [16/16] %v669, 128
          %v718 = vpop.trf.xlu0
          %v719 = vpop.trf.xlu0
          %v720 = vpop.trf.xlu0
          %v721 = vpop.trf.xlu0
          %v722 = vpop.trf.xlu0
          %v723 = vpop.trf.xlu0
          %v724 = vpop.trf.xlu0
          %v725 = vpop.trf.xlu0
          %v726 = vpop.trf.xlu0
          %v727 = vpop.trf.xlu0
          %v728 = vpop.trf.xlu0
          %v729 = vpop.trf.xlu0
          %v730 = vpop.trf.xlu0
          %v731 = vpop.trf.xlu0
          %v732 = vpop.trf.xlu0
          %v733 = vpop.trf.xlu0
          %v736 = vcombine.low %v686, %v718
          %v738 = vunpack.c.l.s4 1966171168
          %v739 = vunpack.c.0.s8 %v738
          %v740 = vlaneseq
          %v741 = vshrl.u32 %v740, 7
          %v742 = vsub.s32 %v739, %v741
          %v743 = vrot.slane %v736, %v742
          %v745 = vunpack.c.l.s4 1966171168
          %v746 = vunpack.c.0.s8 %v745
          %v747 = vlaneseq
          %v748 = vshrl.u32 %v747, 7
          %v749 = vsub.s32 %v746, %v748
          %v750 = vrot.slane %v743, %v749
          %v752 = vadd.f32 %v381, %v750
          %v753 = vlaneseq
          %vm754 = vcmp.ge.s32.totalorder %v753, 0
          %vm755 = vcmp.lt.s32.totalorder %v753, 256
          %vm756 = vmand %vm754, %vm755
          %757 = vst.msk [vmem:[#allocation2] sm:$0x3] %vm756, %v752
        $region44: #{tpu_custom_call.1} parent=27 // pred_fallthru
          _
        // Predicated region
        $region45: #{tpu_custom_call.1} parent=27 // pred_check
          _
        $region46: #{tpu_custom_call.1} parent=27 // pred_check_branch
          %759 = sbr.rel (%p241) target = $region48
        $region47: #{tpu_custom_call.1} parent=27 // pred_region
          %v760 = vld [vmem:[#allocation2] sm:$0x3]
          %v761 = vmax.f32 %v760, 1e-24
          %v762 = vrsqrt.pop %v761
          %v763 = vlaneseq
          %vm764 = vcmp.ge.s32.totalorder %v763, 0
          %vm765 = vcmp.lt.s32.totalorder %v763, 256
          %vm766 = vmand %vm764, %vm765
          %767 = vst.msk [vmem:[#allocation2] sm:$0x3] %vm766, %v762
        $region48: #{tpu_custom_call.1} parent=27 // pred_fallthru
          _
        %v768 = vld [vmem:[%s198] sm:$0xff]
        %v769 = vld [vmem:[%s198 + $0x8] sm:$0xff]
        %v770 = vld [vmem:[%s198 + $0x10] sm:$0xff]
        %v771 = vld [vmem:[%s198 + $0x18] sm:$0xff]
        %v772 = vld [vmem:[%s198 + $0x20] sm:$0xff]
        %v773 = vld [vmem:[%s198 + $0x28] sm:$0xff]
        %v774 = vld [vmem:[%s198 + $0x30] sm:$0xff]
        %v775 = vld [vmem:[%s198 + $0x38] sm:$0xff]
        %v776 = vld [vmem:[%s198 + $0x40] sm:$0xff]
        %v777 = vld [vmem:[%s198 + $0x48] sm:$0xff]
        %v778 = vld [vmem:[%s198 + $0x50] sm:$0xff]
        %v779 = vld [vmem:[%s198 + $0x58] sm:$0xff]
        %v780 = vld [vmem:[%s198 + $0x60] sm:$0xff]
        %v781 = vld [vmem:[%s198 + $0x68] sm:$0xff]
        %v782 = vld [vmem:[%s198 + $0x70] sm:$0xff]
        %v783 = vld [vmem:[%s198 + $0x78] sm:$0xff]
        %v784 = vld [vmem:[%s198 + $0x80] sm:$0xff]
        %v785 = vld [vmem:[%s198 + $0x88] sm:$0xff]
        %v786 = vld [vmem:[%s198 + $0x90] sm:$0xff]
        %v787 = vld [vmem:[%s198 + $0x98] sm:$0xff]
        %v788 = vld [vmem:[%s198 + $0xa0] sm:$0xff]
        %v789 = vld [vmem:[%s198 + $0xa8] sm:$0xff]
        %v790 = vld [vmem:[%s198 + $0xb0] sm:$0xff]
        %v791 = vld [vmem:[%s198 + $0xb8] sm:$0xff]
        %v792 = vld [vmem:[%s198 + $0xc0] sm:$0xff]
        %v793 = vld [vmem:[%s198 + $0xc8] sm:$0xff]
        %v794 = vld [vmem:[%s198 + $0xd0] sm:$0xff]
        %v795 = vld [vmem:[%s198 + $0xd8] sm:$0xff]
        %v796 = vld [vmem:[%s198 + $0xe0] sm:$0xff]
        %v797 = vld [vmem:[%s198 + $0xe8] sm:$0xff]
        %v798 = vld [vmem:[%s198 + $0xf0] sm:$0xff]
        %v799 = vld [vmem:[%s198 + $0xf8] sm:$0xff]
        %v800 = vld [vmem:[%s198 + $0x100] sm:$0xff]
        %v801 = vld [vmem:[%s198 + $0x108] sm:$0xff]
        %v802 = vld [vmem:[%s198 + $0x110] sm:$0xff]
        %v803 = vld [vmem:[%s198 + $0x118] sm:$0xff]
        %v804 = vld [vmem:[%s198 + $0x120] sm:$0xff]
        %v805 = vld [vmem:[%s198 + $0x128] sm:$0xff]
        %v806 = vld [vmem:[%s198 + $0x130] sm:$0xff]
        %v807 = vld [vmem:[%s198 + $0x138] sm:$0xff]
        %v808 = vld [vmem:[%s198 + $0x140] sm:$0xff]
        %v809 = vld [vmem:[%s198 + $0x148] sm:$0xff]
        %v810 = vld [vmem:[%s198 + $0x150] sm:$0xff]
        %v811 = vld [vmem:[%s198 + $0x158] sm:$0xff]
        %v812 = vld [vmem:[%s198 + $0x160] sm:$0xff]
        %v813 = vld [vmem:[%s198 + $0x168] sm:$0xff]
        %v814 = vld [vmem:[%s198 + $0x170] sm:$0xff]
        %v815 = vld [vmem:[%s198 + $0x178] sm:$0xff]
        %v816 = vld [vmem:[%s198 + $0x180] sm:$0xff]
        %v817 = vld [vmem:[%s198 + $0x188] sm:$0xff]
        %v818 = vld [vmem:[%s198 + $0x190] sm:$0xff]
        %v819 = vld [vmem:[%s198 + $0x198] sm:$0xff]
        %v820 = vld [vmem:[%s198 + $0x1a0] sm:$0xff]
        %v821 = vld [vmem:[%s198 + $0x1a8] sm:$0xff]
        %v822 = vld [vmem:[%s198 + $0x1b0] sm:$0xff]
        %v823 = vld [vmem:[%s198 + $0x1b8] sm:$0xff]
        %v824 = vld [vmem:[%s198 + $0x1c0] sm:$0xff]
        %v825 = vld [vmem:[%s198 + $0x1c8] sm:$0xff]
        %v826 = vld [vmem:[%s198 + $0x1d0] sm:$0xff]
        %v827 = vld [vmem:[%s198 + $0x1d8] sm:$0xff]
        %v828 = vld [vmem:[%s198 + $0x1e0] sm:$0xff]
        %v829 = vld [vmem:[%s198 + $0x1e8] sm:$0xff]
        %v830 = vld [vmem:[%s198 + $0x1f0] sm:$0xff]
        %v831 = vld [vmem:[%s198 + $0x1f8] sm:$0xff]
        %v832 = vld [vmem:[%s207] sm:$0xff]
        %v833 = vld [vmem:[%s207 + $0x8] sm:$0xff]
        %v834 = vld [vmem:[%s207 + $0x10] sm:$0xff]
        %v835 = vld [vmem:[%s207 + $0x18] sm:$0xff]
        %v836 = vld [vmem:[%s207 + $0x20] sm:$0xff]
        %v837 = vld [vmem:[%s207 + $0x28] sm:$0xff]
        %v838 = vld [vmem:[%s207 + $0x30] sm:$0xff]
        %v839 = vld [vmem:[%s207 + $0x38] sm:$0xff]
        %v840 = vld [vmem:[%s207 + $0x40] sm:$0xff]
        %v841 = vld [vmem:[%s207 + $0x48] sm:$0xff]
        %v842 = vld [vmem:[%s207 + $0x50] sm:$0xff]
        %v843 = vld [vmem:[%s207 + $0x58] sm:$0xff]
        %v844 = vld [vmem:[%s207 + $0x60] sm:$0xff]
        %v845 = vld [vmem:[%s207 + $0x68] sm:$0xff]
        %v846 = vld [vmem:[%s207 + $0x70] sm:$0xff]
        %v847 = vld [vmem:[%s207 + $0x78] sm:$0xff]
        %v848 = vld [vmem:[%s207 + $0x80] sm:$0xff]
        %v849 = vld [vmem:[%s207 + $0x88] sm:$0xff]
        %v850 = vld [vmem:[%s207 + $0x90] sm:$0xff]
        %v851 = vld [vmem:[%s207 + $0x98] sm:$0xff]
        %v852 = vld [vmem:[%s207 + $0xa0] sm:$0xff]
        %v853 = vld [vmem:[%s207 + $0xa8] sm:$0xff]
        %v854 = vld [vmem:[%s207 + $0xb0] sm:$0xff]
        %v855 = vld [vmem:[%s207 + $0xb8] sm:$0xff]
        %v856 = vld [vmem:[%s207 + $0xc0] sm:$0xff]
        %v857 = vld [vmem:[%s207 + $0xc8] sm:$0xff]
        %v858 = vld [vmem:[%s207 + $0xd0] sm:$0xff]
        %v859 = vld [vmem:[%s207 + $0xd8] sm:$0xff]
        %v860 = vld [vmem:[%s207 + $0xe0] sm:$0xff]
        %v861 = vld [vmem:[%s207 + $0xe8] sm:$0xff]
        %v862 = vld [vmem:[%s207 + $0xf0] sm:$0xff]
        %v863 = vld [vmem:[%s207 + $0xf8] sm:$0xff]
        %v864 = vld [vmem:[%s207 + $0x100] sm:$0xff]
        %v865 = vld [vmem:[%s207 + $0x108] sm:$0xff]
        %v866 = vld [vmem:[%s207 + $0x110] sm:$0xff]
        %v867 = vld [vmem:[%s207 + $0x118] sm:$0xff]
        %v868 = vld [vmem:[%s207 + $0x120] sm:$0xff]
        %v869 = vld [vmem:[%s207 + $0x128] sm:$0xff]
        %v870 = vld [vmem:[%s207 + $0x130] sm:$0xff]
        %v871 = vld [vmem:[%s207 + $0x138] sm:$0xff]
        %v872 = vld [vmem:[%s207 + $0x140] sm:$0xff]
        %v873 = vld [vmem:[%s207 + $0x148] sm:$0xff]
        %v874 = vld [vmem:[%s207 + $0x150] sm:$0xff]
        %v875 = vld [vmem:[%s207 + $0x158] sm:$0xff]
        %v876 = vld [vmem:[%s207 + $0x160] sm:$0xff]
        %v877 = vld [vmem:[%s207 + $0x168] sm:$0xff]
        %v878 = vld [vmem:[%s207 + $0x170] sm:$0xff]
        %v879 = vld [vmem:[%s207 + $0x178] sm:$0xff]
        %v880 = vld [vmem:[%s207 + $0x180] sm:$0xff]
        %v881 = vld [vmem:[%s207 + $0x188] sm:$0xff]
        %v882 = vld [vmem:[%s207 + $0x190] sm:$0xff]
        %v883 = vld [vmem:[%s207 + $0x198] sm:$0xff]
        %v884 = vld [vmem:[%s207 + $0x1a0] sm:$0xff]
        %v885 = vld [vmem:[%s207 + $0x1a8] sm:$0xff]
        %v886 = vld [vmem:[%s207 + $0x1b0] sm:$0xff]
        %v887 = vld [vmem:[%s207 + $0x1b8] sm:$0xff]
        %v888 = vld [vmem:[%s207 + $0x1c0] sm:$0xff]
        %v889 = vld [vmem:[%s207 + $0x1c8] sm:$0xff]
        %v890 = vld [vmem:[%s207 + $0x1d0] sm:$0xff]
        %v891 = vld [vmem:[%s207 + $0x1d8] sm:$0xff]
        %v892 = vld [vmem:[%s207 + $0x1e0] sm:$0xff]
        %v893 = vld [vmem:[%s207 + $0x1e8] sm:$0xff]
        %v894 = vld [vmem:[%s207 + $0x1f0] sm:$0xff]
        %v895 = vld [vmem:[%s207 + $0x1f8] sm:$0xff]
        %v896 = vld [vmem:[%s207 + $0x200] sm:$0xff]
        %v897 = vld [vmem:[%s207 + $0x208] sm:$0xff]
        %v898 = vld [vmem:[%s207 + $0x210] sm:$0xff]
        %v899 = vld [vmem:[%s207 + $0x218] sm:$0xff]
        %v900 = vld [vmem:[%s207 + $0x220] sm:$0xff]
        %v901 = vld [vmem:[%s207 + $0x228] sm:$0xff]
        %v902 = vld [vmem:[%s207 + $0x230] sm:$0xff]
        %v903 = vld [vmem:[%s207 + $0x238] sm:$0xff]
        %v904 = vld [vmem:[%s207 + $0x240] sm:$0xff]
        %v905 = vld [vmem:[%s207 + $0x248] sm:$0xff]
        %v906 = vld [vmem:[%s207 + $0x250] sm:$0xff]
        %v907 = vld [vmem:[%s207 + $0x258] sm:$0xff]
        %v908 = vld [vmem:[%s207 + $0x260] sm:$0xff]
        %v909 = vld [vmem:[%s207 + $0x268] sm:$0xff]
        %v910 = vld [vmem:[%s207 + $0x270] sm:$0xff]
        %v911 = vld [vmem:[%s207 + $0x278] sm:$0xff]
        %v912 = vld [vmem:[%s207 + $0x280] sm:$0xff]
        %v913 = vld [vmem:[%s207 + $0x288] sm:$0xff]
        %v914 = vld [vmem:[%s207 + $0x290] sm:$0xff]
        %v915 = vld [vmem:[%s207 + $0x298] sm:$0xff]
        %v916 = vld [vmem:[%s207 + $0x2a0] sm:$0xff]
        %v917 = vld [vmem:[%s207 + $0x2a8] sm:$0xff]
        %v918 = vld [vmem:[%s207 + $0x2b0] sm:$0xff]
        %v919 = vld [vmem:[%s207 + $0x2b8] sm:$0xff]
        %v920 = vld [vmem:[%s207 + $0x2c0] sm:$0xff]
        %v921 = vld [vmem:[%s207 + $0x2c8] sm:$0xff]
        %v922 = vld [vmem:[%s207 + $0x2d0] sm:$0xff]
        %v923 = vld [vmem:[%s207 + $0x2d8] sm:$0xff]
        %v924 = vld [vmem:[%s207 + $0x2e0] sm:$0xff]
        %v925 = vld [vmem:[%s207 + $0x2e8] sm:$0xff]
        %v926 = vld [vmem:[%s207 + $0x2f0] sm:$0xff]
        %v927 = vld [vmem:[%s207 + $0x2f8] sm:$0xff]
        %v928 = vld [vmem:[%s207 + $0x300] sm:$0xff]
        %v929 = vld [vmem:[%s207 + $0x308] sm:$0xff]
        %v930 = vld [vmem:[%s207 + $0x310] sm:$0xff]
        %v931 = vld [vmem:[%s207 + $0x318] sm:$0xff]
        %v932 = vld [vmem:[%s207 + $0x320] sm:$0xff]
        %v933 = vld [vmem:[%s207 + $0x328] sm:$0xff]
        %v934 = vld [vmem:[%s207 + $0x330] sm:$0xff]
        %v935 = vld [vmem:[%s207 + $0x338] sm:$0xff]
        %v936 = vld [vmem:[%s207 + $0x340] sm:$0xff]
        %v937 = vld [vmem:[%s207 + $0x348] sm:$0xff]
        %v938 = vld [vmem:[%s207 + $0x350] sm:$0xff]
        %v939 = vld [vmem:[%s207 + $0x358] sm:$0xff]
        %v940 = vld [vmem:[%s207 + $0x360] sm:$0xff]
        %v941 = vld [vmem:[%s207 + $0x368] sm:$0xff]
        %v942 = vld [vmem:[%s207 + $0x370] sm:$0xff]
        %v943 = vld [vmem:[%s207 + $0x378] sm:$0xff]
        %v944 = vld [vmem:[%s207 + $0x380] sm:$0xff]
        %v945 = vld [vmem:[%s207 + $0x388] sm:$0xff]
        %v946 = vld [vmem:[%s207 + $0x390] sm:$0xff]
        %v947 = vld [vmem:[%s207 + $0x398] sm:$0xff]
        %v948 = vld [vmem:[%s207 + $0x3a0] sm:$0xff]
        %v949 = vld [vmem:[%s207 + $0x3a8] sm:$0xff]
        %v950 = vld [vmem:[%s207 + $0x3b0] sm:$0xff]
        %v951 = vld [vmem:[%s207 + $0x3b8] sm:$0xff]
        %v952 = vld [vmem:[%s207 + $0x3c0] sm:$0xff]
        %v953 = vld [vmem:[%s207 + $0x3c8] sm:$0xff]
        %v954 = vld [vmem:[%s207 + $0x3d0] sm:$0xff]
        %v955 = vld [vmem:[%s207 + $0x3d8] sm:$0xff]
        %v956 = vld [vmem:[%s207 + $0x3e0] sm:$0xff]
        %v957 = vld [vmem:[%s207 + $0x3e8] sm:$0xff]
        %v958 = vld [vmem:[%s207 + $0x3f0] sm:$0xff]
        %v959 = vld [vmem:[%s207 + $0x3f8] sm:$0xff]
        %960 = vmatprep.subr.mxu0 %v833
        %961 = vmatpush1.xpose.msra.mxu0 %v832
        %962 = vmatprep.subr.mxu0 %v837
        %963 = vmatpush1.xpose.msra.mxu0 %v836
        %964 = vmatprep.subr.mxu0 %v841
        %965 = vmatpush1.xpose.msra.mxu0 %v840
        %966 = vmatprep.subr.mxu0 %v845
        %967 = vmatpush1.xpose.msra.mxu0 %v844
        %968 = vmatprep.subr.mxu0 %v849
        %969 = vmatpush1.xpose.msra.mxu0 %v848
        %970 = vmatprep.subr.mxu0 %v853
        %971 = vmatpush1.xpose.msra.mxu0 %v852
        %972 = vmatprep.subr.mxu0 %v857
        %973 = vmatpush1.xpose.msra.mxu0 %v856
        %974 = vmatprep.subr.mxu0 %v861
        %975 = vmatpush1.xpose.msra.mxu0 %v860
        %976 = vmatprep.subr.mxu0 %v865
        %977 = vmatpush1.xpose.msra.mxu0 %v864
        %978 = vmatprep.subr.mxu0 %v869
        %979 = vmatpush1.xpose.msra.mxu0 %v868
        %980 = vmatprep.subr.mxu0 %v873
        %981 = vmatpush1.xpose.msra.mxu0 %v872
        %982 = vmatprep.subr.mxu0 %v877
        %983 = vmatpush1.xpose.msra.mxu0 %v876
        %984 = vmatprep.subr.mxu0 %v881
        %985 = vmatpush1.xpose.msra.mxu0 %v880
        %986 = vmatprep.subr.mxu0 %v885
        %987 = vmatpush1.xpose.msra.mxu0 %v884
        %988 = vmatprep.subr.mxu0 %v889
        %989 = vmatpush1.xpose.msra.mxu0 %v888
        %990 = vmatprep.subr.mxu0 %v893
        %991 = vmatpush1.xpose.msra.mxu0 %v892
        %992 = vmatprep.subr.mxu0 %v897
        %993 = vmatpush1.xpose.msra.mxu0 %v896
        %994 = vmatprep.subr.mxu0 %v901
        %995 = vmatpush1.xpose.msra.mxu0 %v900
        %996 = vmatprep.subr.mxu0 %v905
        %997 = vmatpush1.xpose.msra.mxu0 %v904
        %998 = vmatprep.subr.mxu0 %v909
        %999 = vmatpush1.xpose.msra.mxu0 %v908
        %1000 = vmatprep.subr.mxu0 %v913
        %1001 = vmatpush1.xpose.msra.mxu0 %v912
        %1002 = vmatprep.subr.mxu0 %v917
        %1003 = vmatpush1.xpose.msra.mxu0 %v916
        %1004 = vmatprep.subr.mxu0 %v921
        %1005 = vmatpush1.xpose.msra.mxu0 %v920
        %1006 = vmatprep.subr.mxu0 %v925
        %1007 = vmatpush1.xpose.msra.mxu0 %v924
        %1008 = vmatprep.subr.mxu0 %v929
        %1009 = vmatpush1.xpose.msra.mxu0 %v928
        %1010 = vmatprep.subr.mxu0 %v933
        %1011 = vmatpush1.xpose.msra.mxu0 %v932
        %1012 = vmatprep.subr.mxu0 %v937
        %1013 = vmatpush1.xpose.msra.mxu0 %v936
        %1014 = vmatprep.subr.mxu0 %v941
        %1015 = vmatpush1.xpose.msra.mxu0 %v940
        %1016 = vmatprep.subr.mxu0 %v945
        %1017 = vmatpush1.xpose.msra.mxu0 %v944
        %1018 = vmatprep.subr.mxu0 %v949
        %1019 = vmatpush1.xpose.msra.mxu0 %v948
        %1020 = vmatprep.subr.mxu0 %v953
        %1021 = vmatpush1.xpose.msra.mxu0 %v952
        %1022 = vmatprep.subr.mxu0 %v957
        %1023 = vmatpush1.xpose.msra.mxu0 %v956
        %1024 = vmatprep.mubr.f32.mxu0 %v769
        %1025 = vmatmul.mubr.f32.gmra.mrb[0].mxu0 %v768
        %v1026 = vpop.f32.mrb[0].mxu0
        %v1027 = vadd.f32 0.0, %v1026
        %v1028 = vpop.f32.mrb[0].mxu0
        %v1029 = vadd.f32 0.0, %v1028
        %1030 = vmatprep.mubr.f32.mxu0 %v773
        %1031 = vmatmul.mubr.f32.gmra.mrb[0].mxu0 %v772
        %v1032 = vpop.f32.mrb[0].mxu0
        %v1033 = vadd.f32 0.0, %v1032
        %v1034 = vpop.f32.mrb[0].mxu0
        %v1035 = vadd.f32 0.0, %v1034
        %1036 = vmatprep.mubr.f32.mxu0 %v777
        %1037 = vmatmul.mubr.f32.gmra.mrb[0].mxu0 %v776
        %v1038 = vpop.f32.mrb[0].mxu0
        %v1039 = vadd.f32 0.0, %v1038
        %v1040 = vpop.f32.mrb[0].mxu0
        %v1041 = vadd.f32 0.0, %v1040
        %1042 = vmatprep.mubr.f32.mxu0 %v781
        %1043 = vmatmul.mubr.f32.gmra.mrb[0].mxu0 %v780
        %v1044 = vpop.f32.mrb[0].mxu0
        %v1045 = vadd.f32 0.0, %v1044
        %v1046 = vpop.f32.mrb[0].mxu0
        %v1047 = vadd.f32 0.0, %v1046
        %1048 = vmatprep.mubr.f32.mxu0 %v785
        %1049 = vmatmul.mubr.f32.gmra.mrb[0].mxu0 %v784
        %v1050 = vpop.f32.mrb[0].mxu0
        %v1051 = vadd.f32 0.0, %v1050
        %v1052 = vpop.f32.mrb[0].mxu0
        %v1053 = vadd.f32 0.0, %v1052
        %1054 = vmatprep.mubr.f32.mxu0 %v789
        %1055 = vmatmul.mubr.f32.gmra.mrb[0].mxu0 %v788
        %v1056 = vpop.f32.mrb[0].mxu0
        %v1057 = vadd.f32 0.0, %v1056
        %v1058 = vpop.f32.mrb[0].mxu0
        %v1059 = vadd.f32 0.0, %v1058
        %1060 = vmatprep.mubr.f32.mxu0 %v793
        %1061 = vmatmul.mubr.f32.gmra.mrb[0].mxu0 %v792
        %v1062 = vpop.f32.mrb[0].mxu0
        %v1063 = vadd.f32 0.0, %v1062
        %v1064 = vpop.f32.mrb[0].mxu0
        %v1065 = vadd.f32 0.0, %v1064
        %1066 = vmatprep.mubr.f32.mxu0 %v797
        %1067 = vmatmul.mubr.f32.gmra.mrb[0].mxu0 %v796
        %v1068 = vpop.f32.mrb[0].mxu0
        %v1069 = vadd.f32 0.0, %v1068
        %v1070 = vpop.f32.mrb[0].mxu0
        %v1071 = vadd.f32 0.0, %v1070
        %1072 = vmatprep.mubr.f32.mxu0 %v801
        %1073 = vmatmul.mubr.f32.gmra.mrb[0].mxu0 %v800
        %v1074 = vpop.f32.mrb[0].mxu0
        %v1075 = vadd.f32 0.0, %v1074
        %v1076 = vpop.f32.mrb[0].mxu0
        %v1077 = vadd.f32 0.0, %v1076
        %1078 = vmatprep.mubr.f32.mxu0 %v805
        %1079 = vmatmul.mubr.f32.gmra.mrb[0].mxu0 %v804
        %v1080 = vpop.f32.mrb[0].mxu0
        %v1081 = vadd.f32 0.0, %v1080
        %v1082 = vpop.f32.mrb[0].mxu0
        %v1083 = vadd.f32 0.0, %v1082
        %1084 = vmatprep.mubr.f32.mxu0 %v809
        %1085 = vmatmul.mubr.f32.gmra.mrb[0].mxu0 %v808
        %v1086 = vpop.f32.mrb[0].mxu0
        %v1087 = vadd.f32 0.0, %v1086
        %v1088 = vpop.f32.mrb[0].mxu0
        %v1089 = vadd.f32 0.0, %v1088
        %1090 = vmatprep.mubr.f32.mxu0 %v813
        %1091 = vmatmul.mubr.f32.gmra.mrb[0].mxu0 %v812
        %v1092 = vpop.f32.mrb[0].mxu0
        %v1093 = vadd.f32 0.0, %v1092
        %v1094 = vpop.f32.mrb[0].mxu0
        %v1095 = vadd.f32 0.0, %v1094
        %1096 = vmatprep.mubr.f32.mxu0 %v817
        %1097 = vmatmul.mubr.f32.gmra.mrb[0].mxu0 %v816
        %v1098 = vpop.f32.mrb[0].mxu0
        %v1099 = vadd.f32 0.0, %v1098
        %v1100 = vpop.f32.mrb[0].mxu0
        %v1101 = vadd.f32 0.0, %v1100
        %1102 = vmatprep.mubr.f32.mxu0 %v821
        %1103 = vmatmul.mubr.f32.gmra.mrb[0].mxu0 %v820
        %v1104 = vpop.f32.mrb[0].mxu0
        %v1105 = vadd.f32 0.0, %v1104
        %v1106 = vpop.f32.mrb[0].mxu0
        %v1107 = vadd.f32 0.0, %v1106
        %1108 = vmatprep.mubr.f32.mxu0 %v825
        %1109 = vmatmul.mubr.f32.gmra.mrb[0].mxu0 %v824
        %v1110 = vpop.f32.mrb[0].mxu0
        %v1111 = vadd.f32 0.0, %v1110
        %v1112 = vpop.f32.mrb[0].mxu0
        %v1113 = vadd.f32 0.0, %v1112
        %1114 = vmatprep.mubr.f32.mxu0 %v829
        %1115 = vmatmul.mubr.f32.gmra.mrb[0].mxu0 %v828
        %v1116 = vpop.f32.mrb[0].mxu0
        %v1117 = vadd.f32 0.0, %v1116
        %v1118 = vpop.f32.mrb[0].mxu0
        %v1119 = vadd.f32 0.0, %v1118
        %1120 = vdwg.mxu0
        %1121 = vmatprep.subr.mxu0 %v835
        %1122 = vmatpush1.xpose.msra.mxu0 %v834
        %1123 = vmatprep.subr.mxu0 %v839
        %1124 = vmatpush1.xpose.msra.mxu0 %v838
        %1125 = vmatprep.subr.mxu0 %v843
        %1126 = vmatpush1.xpose.msra.mxu0 %v842
        %1127 = vmatprep.subr.mxu0 %v847
        %1128 = vmatpush1.xpose.msra.mxu0 %v846
        %1129 = vmatprep.subr.mxu0 %v851
        %1130 = vmatpush1.xpose.msra.mxu0 %v850
        %1131 = vmatprep.subr.mxu0 %v855
        %1132 = vmatpush1.xpose.msra.mxu0 %v854
        %1133 = vmatprep.subr.mxu0 %v859
        %1134 = vmatpush1.xpose.msra.mxu0 %v858
        %1135 = vmatprep.subr.mxu0 %v863
        %1136 = vmatpush1.xpose.msra.mxu0 %v862
        %1137 = vmatprep.subr.mxu0 %v867
        %1138 = vmatpush1.xpose.msra.mxu0 %v866
        %1139 = vmatprep.subr.mxu0 %v871
        %1140 = vmatpush1.xpose.msra.mxu0 %v870
        %1141 = vmatprep.subr.mxu0 %v875
        %1142 = vmatpush1.xpose.msra.mxu0 %v874
        %1143 = vmatprep.subr.mxu0 %v879
        %1144 = vmatpush1.xpose.msra.mxu0 %v878
        %1145 = vmatprep.subr.mxu0 %v883
        %1146 = vmatpush1.xpose.msra.mxu0 %v882
        %1147 = vmatprep.subr.mxu0 %v887
        %1148 = vmatpush1.xpose.msra.mxu0 %v886
        %1149 = vmatprep.subr.mxu0 %v891
        %1150 = vmatpush1.xpose.msra.mxu0 %v890
        %1151 = vmatprep.subr.mxu0 %v895
        %1152 = vmatpush1.xpose.msra.mxu0 %v894
        %1153 = vmatprep.subr.mxu0 %v899
        %1154 = vmatpush1.xpose.msra.mxu0 %v898
        %1155 = vmatprep.subr.mxu0 %v903
        %1156 = vmatpush1.xpose.msra.mxu0 %v902
        %1157 = vmatprep.subr.mxu0 %v907
        %1158 = vmatpush1.xpose.msra.mxu0 %v906
        %1159 = vmatprep.subr.mxu0 %v911
        %1160 = vmatpush1.xpose.msra.mxu0 %v910
        %1161 = vmatprep.subr.mxu0 %v915
        %1162 = vmatpush1.xpose.msra.mxu0 %v914
        %1163 = vmatprep.subr.mxu0 %v919
        %1164 = vmatpush1.xpose.msra.mxu0 %v918
        %1165 = vmatprep.subr.mxu0 %v923
        %1166 = vmatpush1.xpose.msra.mxu0 %v922
        %1167 = vmatprep.subr.mxu0 %v927
        %1168 = vmatpush1.xpose.msra.mxu0 %v926
        %1169 = vmatprep.subr.mxu0 %v931
        %1170 = vmatpush1.xpose.msra.mxu0 %v930
        %1171 = vmatprep.subr.mxu0 %v935
        %1172 = vmatpush1.xpose.msra.mxu0 %v934
        %1173 = vmatprep.subr.mxu0 %v939
        %1174 = vmatpush1.xpose.msra.mxu0 %v938
        %1175 = vmatprep.subr.mxu0 %v943
        %1176 = vmatpush1.xpose.msra.mxu0 %v942
        %1177 = vmatprep.subr.mxu0 %v947
        %1178 = vmatpush1.xpose.msra.mxu0 %v946
        %1179 = vmatprep.subr.mxu0 %v951
        %1180 = vmatpush1.xpose.msra.mxu0 %v950
        %1181 = vmatprep.subr.mxu0 %v955
        %1182 = vmatpush1.xpose.msra.mxu0 %v954
        %1183 = vmatprep.subr.mxu0 %v959
        %1184 = vmatpush1.xpose.msra.mxu0 %v958
        %1185 = vmatprep.mubr.f32.mxu0 %v771
        %1186 = vmatmul.mubr.f32.gmra.mrb[0].mxu0 %v770
        %v1187 = vpop.f32.mrb[0].mxu0
        %v1188 = vadd.f32 %v1027, %v1187
        %v1189 = vpop.f32.mrb[0].mxu0
        %v1190 = vadd.f32 %v1029, %v1189
        %1191 = vmatprep.mubr.f32.mxu0 %v775
        %1192 = vmatmul.mubr.f32.gmra.mrb[0].mxu0 %v774
        %v1193 = vpop.f32.mrb[0].mxu0
        %v1194 = vadd.f32 %v1033, %v1193
        %v1195 = vpop.f32.mrb[0].mxu0
        %v1196 = vadd.f32 %v1035, %v1195
        %1197 = vmatprep.mubr.f32.mxu0 %v779
        %1198 = vmatmul.mubr.f32.gmra.mrb[0].mxu0 %v778
        %v1199 = vpop.f32.mrb[0].mxu0
        %v1200 = vadd.f32 %v1039, %v1199
        %v1201 = vpop.f32.mrb[0].mxu0
        %v1202 = vadd.f32 %v1041, %v1201
        %1203 = vmatprep.mubr.f32.mxu0 %v783
        %1204 = vmatmul.mubr.f32.gmra.mrb[0].mxu0 %v782
        %v1205 = vpop.f32.mrb[0].mxu0
        %v1206 = vadd.f32 %v1045, %v1205
        %v1207 = vpop.f32.mrb[0].mxu0
        %v1208 = vadd.f32 %v1047, %v1207
        %1209 = vmatprep.mubr.f32.mxu0 %v787
        %1210 = vmatmul.mubr.f32.gmra.mrb[0].mxu0 %v786
        %v1211 = vpop.f32.mrb[0].mxu0
        %v1212 = vadd.f32 %v1051, %v1211
        %v1213 = vpop.f32.mrb[0].mxu0
        %v1214 = vadd.f32 %v1053, %v1213
        %1215 = vmatprep.mubr.f32.mxu0 %v791
        %1216 = vmatmul.mubr.f32.gmra.mrb[0].mxu0 %v790
        %v1217 = vpop.f32.mrb[0].mxu0
        %v1218 = vadd.f32 %v1057, %v1217
        %v1219 = vpop.f32.mrb[0].mxu0
        %v1220 = vadd.f32 %v1059, %v1219
        %1221 = vmatprep.mubr.f32.mxu0 %v795
        %1222 = vmatmul.mubr.f32.gmra.mrb[0].mxu0 %v794
        %v1223 = vpop.f32.mrb[0].mxu0
        %v1224 = vadd.f32 %v1063, %v1223
        %v1225 = vpop.f32.mrb[0].mxu0
        %v1226 = vadd.f32 %v1065, %v1225
        %1227 = vmatprep.mubr.f32.mxu0 %v799
        %1228 = vmatmul.mubr.f32.gmra.mrb[0].mxu0 %v798
        %v1229 = vpop.f32.mrb[0].mxu0
        %v1230 = vadd.f32 %v1069, %v1229
        %v1231 = vpop.f32.mrb[0].mxu0
        %v1232 = vadd.f32 %v1071, %v1231
        %1233 = vmatprep.mubr.f32.mxu0 %v803
        %1234 = vmatmul.mubr.f32.gmra.mrb[0].mxu0 %v802
        %v1235 = vpop.f32.mrb[0].mxu0
        %v1236 = vadd.f32 %v1075, %v1235
        %v1237 = vpop.f32.mrb[0].mxu0
        %v1238 = vadd.f32 %v1077, %v1237
        %1239 = vmatprep.mubr.f32.mxu0 %v807
        %1240 = vmatmul.mubr.f32.gmra.mrb[0].mxu0 %v806
        %v1241 = vpop.f32.mrb[0].mxu0
        %v1242 = vadd.f32 %v1081, %v1241
        %v1243 = vpop.f32.mrb[0].mxu0
        %v1244 = vadd.f32 %v1083, %v1243
        %1245 = vmatprep.mubr.f32.mxu0 %v811
        %1246 = vmatmul.mubr.f32.gmra.mrb[0].mxu0 %v810
        %v1247 = vpop.f32.mrb[0].mxu0
        %v1248 = vadd.f32 %v1087, %v1247
        %v1249 = vpop.f32.mrb[0].mxu0
        %v1250 = vadd.f32 %v1089, %v1249
        %1251 = vmatprep.mubr.f32.mxu0 %v815
        %1252 = vmatmul.mubr.f32.gmra.mrb[0].mxu0 %v814
        %v1253 = vpop.f32.mrb[0].mxu0
        %v1254 = vadd.f32 %v1093, %v1253
        %v1255 = vpop.f32.mrb[0].mxu0
        %v1256 = vadd.f32 %v1095, %v1255
        %1257 = vmatprep.mubr.f32.mxu0 %v819
        %1258 = vmatmul.mubr.f32.gmra.mrb[0].mxu0 %v818
        %v1259 = vpop.f32.mrb[0].mxu0
        %v1260 = vadd.f32 %v1099, %v1259
        %v1261 = vpop.f32.mrb[0].mxu0
        %v1262 = vadd.f32 %v1101, %v1261
        %1263 = vmatprep.mubr.f32.mxu0 %v823
        %1264 = vmatmul.mubr.f32.gmra.mrb[0].mxu0 %v822
        %v1265 = vpop.f32.mrb[0].mxu0
        %v1266 = vadd.f32 %v1105, %v1265
        %v1267 = vpop.f32.mrb[0].mxu0
        %v1268 = vadd.f32 %v1107, %v1267
        %1269 = vmatprep.mubr.f32.mxu0 %v827
        %1270 = vmatmul.mubr.f32.gmra.mrb[0].mxu0 %v826
        %v1271 = vpop.f32.mrb[0].mxu0
        %v1272 = vadd.f32 %v1111, %v1271
        %v1273 = vpop.f32.mrb[0].mxu0
        %v1274 = vadd.f32 %v1113, %v1273
        %1275 = vmatprep.mubr.f32.mxu0 %v831
        %1276 = vmatmul.mubr.f32.gmra.mrb[0].mxu0 %v830
        %v1277 = vpop.f32.mrb[0].mxu0
        %v1278 = vadd.f32 %v1117, %v1277
        %v1279 = vpop.f32.mrb[0].mxu0
        %v1280 = vadd.f32 %v1119, %v1279
        %1281 = vdwg.mxu0
        // Predicated region
        $region49: #{tpu_custom_call.1} parent=27 // pred_check
          %p1282 = pneg %p240
        $region50: #{tpu_custom_call.1} parent=27 // pred_check_branch
          %1284 = sbr.rel (%p1282) target = $region52
        $region51: #{tpu_custom_call.1} parent=27 // pred_region
          %1285 = vst [vmem:[#allocation3] sm:$0xff] %v1188
          %1286 = vst [vmem:[#allocation3 + $0x8] sm:$0xff] %v1190
          %1287 = vst [vmem:[#allocation3 + $0x10] sm:$0xff] %v1194
          %1288 = vst [vmem:[#allocation3 + $0x18] sm:$0xff] %v1196
          %1289 = vst [vmem:[#allocation3 + $0x20] sm:$0xff] %v1200
          %1290 = vst [vmem:[#allocation3 + $0x28] sm:$0xff] %v1202
          %1291 = vst [vmem:[#allocation3 + $0x30] sm:$0xff] %v1206
          %1292 = vst [vmem:[#allocation3 + $0x38] sm:$0xff] %v1208
          %1293 = vst [vmem:[#allocation3 + $0x40] sm:$0xff] %v1212
          %1294 = vst [vmem:[#allocation3 + $0x48] sm:$0xff] %v1214
          %1295 = vst [vmem:[#allocation3 + $0x50] sm:$0xff] %v1218
          %1296 = vst [vmem:[#allocation3 + $0x58] sm:$0xff] %v1220
          %1297 = vst [vmem:[#allocation3 + $0x60] sm:$0xff] %v1224
          %1298 = vst [vmem:[#allocation3 + $0x68] sm:$0xff] %v1226
          %1299 = vst [vmem:[#allocation3 + $0x70] sm:$0xff] %v1230
          %1300 = vst [vmem:[#allocation3 + $0x78] sm:$0xff] %v1232
          %1301 = vst [vmem:[#allocation3 + $0x80] sm:$0xff] %v1236
          %1302 = vst [vmem:[#allocation3 + $0x88] sm:$0xff] %v1238
          %1303 = vst [vmem:[#allocation3 + $0x90] sm:$0xff] %v1242
          %1304 = vst [vmem:[#allocation3 + $0x98] sm:$0xff] %v1244
          %1305 = vst [vmem:[#allocation3 + $0xa0] sm:$0xff] %v1248
          %1306 = vst [vmem:[#allocation3 + $0xa8] sm:$0xff] %v1250
          %1307 = vst [vmem:[#allocation3 + $0xb0] sm:$0xff] %v1254
          %1308 = vst [vmem:[#allocation3 + $0xb8] sm:$0xff] %v1256
          %1309 = vst [vmem:[#allocation3 + $0xc0] sm:$0xff] %v1260
          %1310 = vst [vmem:[#allocation3 + $0xc8] sm:$0xff] %v1262
          %1311 = vst [vmem:[#allocation3 + $0xd0] sm:$0xff] %v1266
          %1312 = vst [vmem:[#allocation3 + $0xd8] sm:$0xff] %v1268
          %1313 = vst [vmem:[#allocation3 + $0xe0] sm:$0xff] %v1272
          %1314 = vst [vmem:[#allocation3 + $0xe8] sm:$0xff] %v1274
          %1315 = vst [vmem:[#allocation3 + $0xf0] sm:$0xff] %v1278
          %1316 = vst [vmem:[#allocation3 + $0xf8] sm:$0xff] %v1280
        $region52: #{tpu_custom_call.1} parent=27 // pred_fallthru
          _
        %p1317 = scmp.gt.s32.totalorder %s29, 0
        // Predicated region
        $region53: #{tpu_custom_call.1} parent=27 // pred_check
          %p1318 = pneg %p1317
        $region54: #{tpu_custom_call.1} parent=27 // pred_check_branch
          %1320 = sbr.rel (%p1318) target = $region56
        $region55: #{tpu_custom_call.1} parent=27 // pred_region
          %v1321 = vld [vmem:[#allocation3] sm:$0xff]
          %v1322 = vld [vmem:[#allocation3 + $0x8] sm:$0xff]
          %v1323 = vld [vmem:[#allocation3 + $0x10] sm:$0xff]
          %v1324 = vld [vmem:[#allocation3 + $0x18] sm:$0xff]
          %v1325 = vld [vmem:[#allocation3 + $0x20] sm:$0xff]
          %v1326 = vld [vmem:[#allocation3 + $0x28] sm:$0xff]
          %v1327 = vld [vmem:[#allocation3 + $0x30] sm:$0xff]
          %v1328 = vld [vmem:[#allocation3 + $0x38] sm:$0xff]
          %v1329 = vld [vmem:[#allocation3 + $0x40] sm:$0xff]
          %v1330 = vld [vmem:[#allocation3 + $0x48] sm:$0xff]
          %v1331 = vld [vmem:[#allocation3 + $0x50] sm:$0xff]
          %v1332 = vld [vmem:[#allocation3 + $0x58] sm:$0xff]
          %v1333 = vld [vmem:[#allocation3 + $0x60] sm:$0xff]
          %v1334 = vld [vmem:[#allocation3 + $0x68] sm:$0xff]
          %v1335 = vld [vmem:[#allocation3 + $0x70] sm:$0xff]
          %v1336 = vld [vmem:[#allocation3 + $0x78] sm:$0xff]
          %v1337 = vld [vmem:[#allocation3 + $0x80] sm:$0xff]
          %v1338 = vld [vmem:[#allocation3 + $0x88] sm:$0xff]
          %v1339 = vld [vmem:[#allocation3 + $0x90] sm:$0xff]
          %v1340 = vld [vmem:[#allocation3 + $0x98] sm:$0xff]
          %v1341 = vld [vmem:[#allocation3 + $0xa0] sm:$0xff]
          %v1342 = vld [vmem:[#allocation3 + $0xa8] sm:$0xff]
          %v1343 = vld [vmem:[#allocation3 + $0xb0] sm:$0xff]
          %v1344 = vld [vmem:[#allocation3 + $0xb8] sm:$0xff]
          %v1345 = vld [vmem:[#allocation3 + $0xc0] sm:$0xff]
          %v1346 = vld [vmem:[#allocation3 + $0xc8] sm:$0xff]
          %v1347 = vld [vmem:[#allocation3 + $0xd0] sm:$0xff]
          %v1348 = vld [vmem:[#allocation3 + $0xd8] sm:$0xff]
          %v1349 = vld [vmem:[#allocation3 + $0xe0] sm:$0xff]
          %v1350 = vld [vmem:[#allocation3 + $0xe8] sm:$0xff]
          %v1351 = vld [vmem:[#allocation3 + $0xf0] sm:$0xff]
          %v1352 = vld [vmem:[#allocation3 + $0xf8] sm:$0xff]
          %v1353 = vadd.f32 %v1321, %v1188
          %v1354 = vadd.f32 %v1322, %v1190
          %v1355 = vadd.f32 %v1323, %v1194
          %v1356 = vadd.f32 %v1324, %v1196
          %v1357 = vadd.f32 %v1325, %v1200
          %v1358 = vadd.f32 %v1326, %v1202
          %v1359 = vadd.f32 %v1327, %v1206
          %v1360 = vadd.f32 %v1328, %v1208
          %v1361 = vadd.f32 %v1329, %v1212
          %v1362 = vadd.f32 %v1330, %v1214
          %v1363 = vadd.f32 %v1331, %v1218
          %v1364 = vadd.f32 %v1332, %v1220
          %v1365 = vadd.f32 %v1333, %v1224
          %v1366 = vadd.f32 %v1334, %v1226
          %v1367 = vadd.f32 %v1335, %v1230
          %v1368 = vadd.f32 %v1336, %v1232
          %v1369 = vadd.f32 %v1337, %v1236
          %v1370 = vadd.f32 %v1338, %v1238
          %v1371 = vadd.f32 %v1339, %v1242
          %v1372 = vadd.f32 %v1340, %v1244
          %v1373 = vadd.f32 %v1341, %v1248
          %v1374 = vadd.f32 %v1342, %v1250
          %v1375 = vadd.f32 %v1343, %v1254
          %v1376 = vadd.f32 %v1344, %v1256
          %v1377 = vadd.f32 %v1345, %v1260
          %v1378 = vadd.f32 %v1346, %v1262
          %v1379 = vadd.f32 %v1347, %v1266
          %v1380 = vadd.f32 %v1348, %v1268
          %v1381 = vadd.f32 %v1349, %v1272
          %v1382 = vadd.f32 %v1350, %v1274
          %v1383 = vadd.f32 %v1351, %v1278
          %v1384 = vadd.f32 %v1352, %v1280
          %1385 = vst [vmem:[#allocation3] sm:$0xff] %v1353
          %1386 = vst [vmem:[#allocation3 + $0x8] sm:$0xff] %v1354
          %1387 = vst [vmem:[#allocation3 + $0x10] sm:$0xff] %v1355
          %1388 = vst [vmem:[#allocation3 + $0x18] sm:$0xff] %v1356
          %1389 = vst [vmem:[#allocation3 + $0x20] sm:$0xff] %v1357
          %1390 = vst [vmem:[#allocation3 + $0x28] sm:$0xff] %v1358
          %1391 = vst [vmem:[#allocation3 + $0x30] sm:$0xff] %v1359
          %1392 = vst [vmem:[#allocation3 + $0x38] sm:$0xff] %v1360
          %1393 = vst [vmem:[#allocation3 + $0x40] sm:$0xff] %v1361
          %1394 = vst [vmem:[#allocation3 + $0x48] sm:$0xff] %v1362
          %1395 = vst [vmem:[#allocation3 + $0x50] sm:$0xff] %v1363
          %1396 = vst [vmem:[#allocation3 + $0x58] sm:$0xff] %v1364
          %1397 = vst [vmem:[#allocation3 + $0x60] sm:$0xff] %v1365
          %1398 = vst [vmem:[#allocation3 + $0x68] sm:$0xff] %v1366
          %1399 = vst [vmem:[#allocation3 + $0x70] sm:$0xff] %v1367
          %1400 = vst [vmem:[#allocation3 + $0x78] sm:$0xff] %v1368
          %1401 = vst [vmem:[#allocation3 + $0x80] sm:$0xff] %v1369
          %1402 = vst [vmem:[#allocation3 + $0x88] sm:$0xff] %v1370
          %1403 = vst [vmem:[#allocation3 + $0x90] sm:$0xff] %v1371
          %1404 = vst [vmem:[#allocation3 + $0x98] sm:$0xff] %v1372
          %1405 = vst [vmem:[#allocation3 + $0xa0] sm:$0xff] %v1373
          %1406 = vst [vmem:[#allocation3 + $0xa8] sm:$0xff] %v1374
          %1407 = vst [vmem:[#allocation3 + $0xb0] sm:$0xff] %v1375
          %1408 = vst [vmem:[#allocation3 + $0xb8] sm:$0xff] %v1376
          %1409 = vst [vmem:[#allocation3 + $0xc0] sm:$0xff] %v1377
          %1410 = vst [vmem:[#allocation3 + $0xc8] sm:$0xff] %v1378
          %1411 = vst [vmem:[#allocation3 + $0xd0] sm:$0xff] %v1379
          %1412 = vst [vmem:[#allocation3 + $0xd8] sm:$0xff] %v1380
          %1413 = vst [vmem:[#allocation3 + $0xe0] sm:$0xff] %v1381
          %1414 = vst [vmem:[#allocation3 + $0xe8] sm:$0xff] %v1382
          %1415 = vst [vmem:[#allocation3 + $0xf0] sm:$0xff] %v1383
          %1416 = vst [vmem:[#allocation3 + $0xf8] sm:$0xff] %v1384
        $region56: #{tpu_custom_call.1} parent=27 // pred_fallthru
          _
        // Predicated region
        $region57: #{tpu_custom_call.1} parent=27 // pred_check
          %p1417 = pneg %p240
        $region58: #{tpu_custom_call.1} parent=27 // pred_check_branch
          %1419 = sbr.rel (%p1417) target = $region60
        $region59: #{tpu_custom_call.1} parent=27 // pred_region
          %v1420 = vld [vmem:[#allocation3] sm:$0xff]
          %v1421 = vld [vmem:[#allocation3 + $0x8] sm:$0xff]
          %v1422 = vld [vmem:[#allocation3 + $0x10] sm:$0xff]
          %v1423 = vld [vmem:[#allocation3 + $0x18] sm:$0xff]
          %v1424 = vld [vmem:[#allocation3 + $0x20] sm:$0xff]
          %v1425 = vld [vmem:[#allocation3 + $0x28] sm:$0xff]
          %v1426 = vld [vmem:[#allocation3 + $0x30] sm:$0xff]
          %v1427 = vld [vmem:[#allocation3 + $0x38] sm:$0xff]
          %v1428 = vld [vmem:[#allocation3 + $0x40] sm:$0xff]
          %v1429 = vld [vmem:[#allocation3 + $0x48] sm:$0xff]
          %v1430 = vld [vmem:[#allocation3 + $0x50] sm:$0xff]
          %v1431 = vld [vmem:[#allocation3 + $0x58] sm:$0xff]
          %v1432 = vld [vmem:[#allocation3 + $0x60] sm:$0xff]
          %v1433 = vld [vmem:[#allocation3 + $0x68] sm:$0xff]
          %v1434 = vld [vmem:[#allocation3 + $0x70] sm:$0xff]
          %v1435 = vld [vmem:[#allocation3 + $0x78] sm:$0xff]
          %v1436 = vld [vmem:[#allocation3 + $0x80] sm:$0xff]
          %v1437 = vld [vmem:[#allocation3 + $0x88] sm:$0xff]
          %v1438 = vld [vmem:[#allocation3 + $0x90] sm:$0xff]
          %v1439 = vld [vmem:[#allocation3 + $0x98] sm:$0xff]
          %v1440 = vld [vmem:[#allocation3 + $0xa0] sm:$0xff]
          %v1441 = vld [vmem:[#allocation3 + $0xa8] sm:$0xff]
          %v1442 = vld [vmem:[#allocation3 + $0xb0] sm:$0xff]
          %v1443 = vld [vmem:[#allocation3 + $0xb8] sm:$0xff]
          %v1444 = vld [vmem:[#allocation3 + $0xc0] sm:$0xff]
          %v1445 = vld [vmem:[#allocation3 + $0xc8] sm:$0xff]
          %v1446 = vld [vmem:[#allocation3 + $0xd0] sm:$0xff]
          %v1447 = vld [vmem:[#allocation3 + $0xd8] sm:$0xff]
          %v1448 = vld [vmem:[#allocation3 + $0xe0] sm:$0xff]
          %v1449 = vld [vmem:[#allocation3 + $0xe8] sm:$0xff]
          %v1450 = vld [vmem:[#allocation3 + $0xf0] sm:$0xff]
          %v1451 = vld [vmem:[#allocation3 + $0xf8] sm:$0xff]
          %v1452 = vld [vmem:[#allocation2] sm:$0x3]
          %v1454 = vlaneseq
          %v1455 = vshrl.u32 %v1454, 7
          %v1456 = vsub.s32 0, %v1455
          %v1457 = vrot.slane %v1452, %v1456
          %v1458 = vlaneseq
          %v1459 = vshrl.u32 %v1458, 7
          %v1460 = vsub.s32 1, %v1459
          %v1461 = vrot.slane %v1452, %v1460
          %v1464 = vmul.f32 %v1420, %v1457
          %v1465 = vmul.f32 %v1421, %v1461
          %v1466 = vmul.f32 %v1422, %v1457
          %v1467 = vmul.f32 %v1423, %v1461
          %v1468 = vmul.f32 %v1424, %v1457
          %v1469 = vmul.f32 %v1425, %v1461
          %v1470 = vmul.f32 %v1426, %v1457
          %v1471 = vmul.f32 %v1427, %v1461
          %v1472 = vmul.f32 %v1428, %v1457
          %v1473 = vmul.f32 %v1429, %v1461
          %v1474 = vmul.f32 %v1430, %v1457
          %v1475 = vmul.f32 %v1431, %v1461
          %v1476 = vmul.f32 %v1432, %v1457
          %v1477 = vmul.f32 %v1433, %v1461
          %v1478 = vmul.f32 %v1434, %v1457
          %v1479 = vmul.f32 %v1435, %v1461
          %v1480 = vmul.f32 %v1436, %v1457
          %v1481 = vmul.f32 %v1437, %v1461
          %v1482 = vmul.f32 %v1438, %v1457
          %v1483 = vmul.f32 %v1439, %v1461
          %v1484 = vmul.f32 %v1440, %v1457
          %v1485 = vmul.f32 %v1441, %v1461
          %v1486 = vmul.f32 %v1442, %v1457
          %v1487 = vmul.f32 %v1443, %v1461
          %v1488 = vmul.f32 %v1444, %v1457
          %v1489 = vmul.f32 %v1445, %v1461
          %v1490 = vmul.f32 %v1446, %v1457
          %v1491 = vmul.f32 %v1447, %v1461
          %v1492 = vmul.f32 %v1448, %v1457
          %v1493 = vmul.f32 %v1449, %v1461
          %v1494 = vmul.f32 %v1450, %v1457
          %v1495 = vmul.f32 %v1451, %v1461
          %1496 = vst [vmem:[%s232] sm:$0xff] %v1464
          %1497 = vst [vmem:[%s232 + $0x8] sm:$0xff] %v1465
          %1498 = vst [vmem:[%s232 + $0x10] sm:$0xff] %v1466
          %1499 = vst [vmem:[%s232 + $0x18] sm:$0xff] %v1467
          %1500 = vst [vmem:[%s232 + $0x20] sm:$0xff] %v1468
          %1501 = vst [vmem:[%s232 + $0x28] sm:$0xff] %v1469
          %1502 = vst [vmem:[%s232 + $0x30] sm:$0xff] %v1470
          %1503 = vst [vmem:[%s232 + $0x38] sm:$0xff] %v1471
          %1504 = vst [vmem:[%s232 + $0x40] sm:$0xff] %v1472
          %1505 = vst [vmem:[%s232 + $0x48] sm:$0xff] %v1473
          %1506 = vst [vmem:[%s232 + $0x50] sm:$0xff] %v1474
          %1507 = vst [vmem:[%s232 + $0x58] sm:$0xff] %v1475
          %1508 = vst [vmem:[%s232 + $0x60] sm:$0xff] %v1476
          %1509 = vst [vmem:[%s232 + $0x68] sm:$0xff] %v1477
          %1510 = vst [vmem:[%s232 + $0x70] sm:$0xff] %v1478
          %1511 = vst [vmem:[%s232 + $0x78] sm:$0xff] %v1479
          %1512 = vst [vmem:[%s232 + $0x80] sm:$0xff] %v1480
          %1513 = vst [vmem:[%s232 + $0x88] sm:$0xff] %v1481
          %1514 = vst [vmem:[%s232 + $0x90] sm:$0xff] %v1482
          %1515 = vst [vmem:[%s232 + $0x98] sm:$0xff] %v1483
          %1516 = vst [vmem:[%s232 + $0xa0] sm:$0xff] %v1484
          %1517 = vst [vmem:[%s232 + $0xa8] sm:$0xff] %v1485
          %1518 = vst [vmem:[%s232 + $0xb0] sm:$0xff] %v1486
          %1519 = vst [vmem:[%s232 + $0xb8] sm:$0xff] %v1487
          %1520 = vst [vmem:[%s232 + $0xc0] sm:$0xff] %v1488
          %1521 = vst [vmem:[%s232 + $0xc8] sm:$0xff] %v1489
          %1522 = vst [vmem:[%s232 + $0xd0] sm:$0xff] %v1490
          %1523 = vst [vmem:[%s232 + $0xd8] sm:$0xff] %v1491
          %1524 = vst [vmem:[%s232 + $0xe0] sm:$0xff] %v1492
          %1525 = vst [vmem:[%s232 + $0xe8] sm:$0xff] %v1493
          %1526 = vst [vmem:[%s232 + $0xf0] sm:$0xff] %v1494
          %1527 = vst [vmem:[%s232 + $0xf8] sm:$0xff] %v1495
        $region60: #{tpu_custom_call.1} parent=27 // pred_fallthru
          _
        %s1528 = sand.u32 %s107, 1
        %s1529 = scalar_lea.sflag [#allocation6], %s1528
        %s1530 = sand.u32 %s107, 1
        %s1531 = smul.addr %s1530, 256
        %s1532 = scalar_lea.vmem [#allocation9], %s1531
        // Predicated region
        $region61: #{tpu_custom_call.1} parent=27 // pred_check
          %p1533 = pneg %p117
        $region62: #{tpu_custom_call.1} parent=27 // pred_check_branch
          %1535 = sbr.rel (%p1533) target = $region64
        $region63: #{tpu_custom_call.1} parent=27 // pred_region
          %s1536 = smul.u32 16, %s28
          %s1537 = smul.u32 2, %s27
          %s1539 = ssub.s32 4096, 4096
          %1540 = vsyncadd %s1529, %s1539
          %s1541 = smul.addr %s1536, 6
          %s1542 = sadd.s32 %s1537, %s1541
          %s1543 = smul.addr %s1542, 128
          %s1544 = scalar_lea.hbm %s2, %s1543
          %s1545 = sshll.u32 %s1532, 4
          %s1546 = int_to_ptr.vmem [resolvable:$true] %s1545
          %1551 = dma.vmem_to_hbm [thread:$0]  %s1546, 4096, %s1544, %s1529, 256, 768, 16
        $region64: #{tpu_custom_call.1} parent=27 // pred_fallthru
          _
      $region28: #{tpu_custom_call.1} parent=5 // pred_fallthru
        _
      %p1552 = scmp.le.s32.totalorder 2, %s17
      // Predicated region
      $region65: #{tpu_custom_call.1} parent=5 // pred_check
        %p1553 = pneg %p1552
      $region66: #{tpu_custom_call.1} parent=5 // pred_check_branch
        %1555 = sbr.rel (%p1553) target = $region68
      $region67: #{tpu_custom_call.1} parent=5 // pred_region
        %s1556 = ssub.s32 %s17, 2
        // Predicated region
        $region69: #{tpu_custom_call.1} parent=67 // pred_check
          %p1557 = pneg %p123
        $region70: #{tpu_custom_call.1} parent=67 // pred_check_branch
          %1559 = sbr.rel (%p1557) target = $region72
        $region71: #{tpu_custom_call.1} parent=67 // pred_region
          %s1560 = sand.u32 %s108, 1
          %s1561 = scalar_lea.sflag [#allocation6], %s1560
          %s1562 = sand.u32 %s108, 1
          %s1563 = smul.addr %s1562, 256
          %s1564 = scalar_lea.vmem [#allocation9], %s1563
          %1565 = dma.done %s1561, 4096
        $region72: #{tpu_custom_call.1} parent=67 // pred_fallthru
          _
      $region68: #{tpu_custom_call.1} parent=5 // pred_fallthru
        _
    $region6: #{tpu_custom_call.1} parent=1 // loop_footer
      %s21 = sadd.s32 1, %s17
    $region7: #{tpu_custom_call.1} parent=1 // loop_footer_branch
      %16 = sbr.rel target = $region3
    $region8: #{tpu_custom_call.1} parent=1 // loop_exit
      _
    %1566 = vsyncpa [#allocation5], 1
    %s1567 = scalar_lea.sflag [#allocation5], 1
    %1568 = vsyncpa %s1567, 1
    %1569 = vsyncpa [#allocation8], 1
    %s1570 = scalar_lea.sflag [#allocation8], 1
    %1571 = vsyncpa %s1570, 1
    %1572 = vsyncpa [#allocation6], 1
    %s1573 = scalar_lea.sflag [#allocation6], 1
    %1574 = vsyncpa %s1573, 1

</llo_original>
